<compile_context>
chip_gen: v7x
topology: tpu7x:2x2x1
jax: 0.10.0
libtpu: 0.0.40
codegen_flags: <defaults>
</compile_context>

<pallas_src>
import functools
import math

import jax
import jax.numpy as jnp
from jax import lax
from jax.experimental import pallas as pl
from jax.experimental.pallas import tpu as pltpu


def _pad8(n):
    return ((n + 7) // 8) * 8


def _log_sigmoid(x):
    # numerically stable log(sigmoid(x)) = min(x,0) - log(1 + exp(-|x|))
    # (kept as log(1+e) rather than log1p for guaranteed Mosaic lowering;
    #  |x| is tiny here so the precision difference is nil)
    return jnp.minimum(x, 0.0) - jnp.log(1.0 + jnp.exp(-jnp.abs(x)))


# ----------------------------- single fused kernel ---------------------------

def _fused_line_kernel(idx_ref, u_ref, c_ref, w1_ref, w2_ref, w3_ref, vec_ref,
                       out_ref, *, B, K, W, D, L, ratio,
                       off_s, off_t, off_ng, off_y):
    f32 = jnp.float32

    # -------- in-kernel embedding gather via one-hot MXU matmuls -------------
    s_idx = idx_ref[off_s:off_s + B, :]            # (B, 1)   int32
    t_idx = idx_ref[off_t:off_t + B, :]            # (B, 1)
    ng_idx = idx_ref[off_ng:off_ng + B * K, :]     # (B*K, 1)
    y_idx = idx_ref[off_y:off_y + B, :]            # (B, 1)

    iota_bw = lax.broadcasted_iota(jnp.int32, (B, W), 1)
    iota_nw = lax.broadcasted_iota(jnp.int32, (B * K, W), 1)
    oh_s = (s_idx == iota_bw).astype(f32)          # (B, W)
    oh_t = (t_idx == iota_bw).astype(f32)          # (B, W)
    oh_ng = (ng_idx == iota_nw).astype(f32)        # (B*K, W)

    u = u_ref[...]                                 # (W, D)
    c = c_ref[...]                                 # (W, D)
    vi = jnp.dot(oh_s, u, preferred_element_type=f32)      # (B, D)
    vo1 = jnp.dot(oh_t, u, preferred_element_type=f32)     # (B, D)
    vng1 = jnp.dot(oh_ng, u, preferred_element_type=f32)   # (B*K, D)
    vo2 = jnp.dot(oh_t, c, preferred_element_type=f32)     # (B, D)
    vng2 = jnp.dot(oh_ng, c, preferred_element_type=f32)   # (B*K, D)

    # -------- forward_line loss ----------------------------------------------
    col = lax.broadcasted_iota(jnp.int32, (B, B * K), 1)
    row = lax.broadcasted_iota(jnp.int32, (B, B * K), 0)
    # neg_mask[b, j] = 1  iff  j // K == b   (block-diagonal selection)
    neg_mask = ((col >= row * K) & (col < (row + 1) * K)).astype(f32)

    def half(vo, vng):
        # positives: all-pairs (B,B), exactly as the torch code produces
        s_pos = lax.dot_general(vi, vo, (((1,), (1,)), ((), ())),
                                preferred_element_type=f32)        # (B, B)
        pos_mean = jnp.mean(_log_sigmoid(s_pos))
        # negatives on the MXU: (B, D) x (B*K, D)^T -> (B, B*K), masked
        s_neg = lax.dot_general(vi, vng, (((1,), (1,)), ((), ())),
                                preferred_element_type=f32)        # (B, B*K)
        neg_mean = jnp.sum(_log_sigmoid(-s_neg) * neg_mask) * (1.0 / B)
        # mean(-(o_pos + o_neg[None,:])) == -(mean(o_pos) + mean(o_neg))
        return -(pos_mean + neg_mean)

    loss1 = half(vo1, vng1) + half(vo2, vng2)

    # -------- forward_classify loss -------------------------------------------
    b1 = vec_ref[0:1, 0:2 * D]; g1 = vec_ref[1:2, 0:2 * D]; be1 = vec_ref[2:3, 0:2 * D]
    b2 = vec_ref[3:4, 0:D];     g2 = vec_ref[4:5, 0:D];     be2 = vec_ref[5:6, 0:D]
    b3 = vec_ref[6:7, 0:L];     g3 = vec_ref[7:8, 0:L];     be3 = vec_ref[8:9, 0:L]

    def bn_relu_train(h, gamma, beta, eps):
        # PyTorch BatchNorm1d in training mode: batch mean, biased variance.
        mu = jnp.mean(h, axis=0, keepdims=True)
        var = jnp.mean(jnp.square(h - mu), axis=0, keepdims=True)
        hn = (h - mu) * lax.rsqrt(var + eps)
        return jnp.maximum(hn * gamma + beta, 0.0)

    x = jnp.concatenate([vi, vo1], axis=1)                           # (B, 2D)
    h1 = jnp.dot(x, w1_ref[...], preferred_element_type=f32) + b1
    h1 = bn_relu_train(h1, g1, be1, float(2 * D))                    # eps = 2*dim
    h2 = jnp.dot(h1, w2_ref[...], preferred_element_type=f32) + b2
    h2 = bn_relu_train(h2, g2, be2, float(D))                        # eps = dim
    h3 = jnp.dot(h2, w3_ref[...], preferred_element_type=f32) + b3
    logits = bn_relu_train(h3, g3, be3, float(D))                    # (B, L)

    # CrossEntropyLoss (reduction='mean')
    m = jnp.max(logits, axis=1, keepdims=True)
    lse = jnp.log(jnp.sum(jnp.exp(logits - m), axis=1, keepdims=True)) + m
    onehot_y = (y_idx == lax.broadcasted_iota(jnp.int32, (B, L), 1)).astype(f32)
    picked = jnp.sum(logits * onehot_y, axis=1, keepdims=True)
    loss2 = jnp.mean(lse - picked)

    out_ref[0, 0] = ratio * loss1 + loss2


# ----------------------------- wrapper ---------------------------------------

_VMEM = pl.BlockSpec(memory_space=pltpu.MemorySpace.VMEM)
_SMEM_OUT = pl.BlockSpec(memory_space=pltpu.MemorySpace.SMEM)


def line_forward(params, s, t, ng, y, *, ratio):
    u = params["u_emd"]
    c = params["context_emd"]
    Wsz, D = u.shape
    B = s.shape[0]
    K = ng.shape[1]
    L = params["w3"].shape[1]

    # Pack all integer inputs into one int32 (rows, 1) slab; every segment
    # starts on an 8-row (sublane) boundary.
    off_s = 0
    off_t = off_s + _pad8(B)
    off_ng = off_t + _pad8(B)
    off_y = off_ng + _pad8(B * K)
    n_rows = off_y + _pad8(B)

    def seg(a, n):
        a = a.reshape(-1).astype(jnp.int32)
        return jnp.pad(a, (0, _pad8(n) - n))

    idx = jnp.concatenate(
        [seg(s, B), seg(t, B), seg(ng, B * K), seg(y, B)]).reshape(n_rows, 1)

    kernel = functools.partial(
        _fused_line_kernel, B=B, K=K, W=Wsz, D=D, L=L, ratio=float(ratio),
        off_s=off_s, off_t=off_t, off_ng=off_ng, off_y=off_y)

    out = pl.pallas_call(
        kernel,
        out_shape=jax.ShapeDtypeStruct((1, 1), jnp.float32),
        in_specs=[_VMEM] * 7,
        out_specs=_SMEM_OUT,
    )(idx, u, c, params["w1"], params["w2"], params["w3"], params["vec_slab"])
    return out[0, 0]


# ----------------------------- pure-JAX reference ----------------------------

def line_forward_ref(params, s, t, ng, y, *, ratio, dim):
    u, c = params["u_emd"], params["context_emd"]
    vi, vo1, vng1 = u[s], u[t], u[ng]
    vo2, vng2 = c[t], c[ng]

    def half(vo, vng):
        o_pos = _log_sigmoid(vi @ vo.T)
        o_neg = jnp.sum(_log_sigmoid(-jnp.sum(vi[:, None, :] * vng, -1)), 1)
        return jnp.mean(-(o_pos + o_neg[None, :]))

    loss_1 = half(vo1, vng1) + half(vo2, vng2)

    def bn_relu(h, g, b, eps):
        mu = jnp.mean(h, 0, keepdims=True)
        var = jnp.mean((h - mu) ** 2, 0, keepdims=True)
        return jnp.maximum((h - mu) / jnp.sqrt(var + eps) * g + b, 0.0)

    x = jnp.concatenate([vi, vo1], 1)
    h = bn_relu(x @ params["w1"] + params["b1"], params["g1"], params["be1"], 2 * dim)
    h = bn_relu(h @ params["w2"] + params["b2"], params["g2"], params["be2"], dim)
    logits = bn_relu(h @ params["w3"] + params["b3"], params["g3"], params["be3"], dim)
    lse = jax.scipy.special.logsumexp(logits, axis=1)
    picked = logits[jnp.arange(logits.shape[0]), y]
    loss_2 = jnp.mean(lse - picked)
    return ratio * loss_1 + loss_2


# ----------------------------- param init (deterministic) --------------------

def init_params(key, word_size, dim, label_size):
    ks = jax.random.split(key, 7)
    initrange = 0.5 / dim
    params = {
        "u_emd": jax.random.uniform(ks[0], (word_size, dim), jnp.float32,
                                    -initrange, initrange),
        "context_emd": jnp.zeros((word_size, dim), jnp.float32),
    }

    def linear(kw, kb, fan_in, fan_out):
        bound = 1.0 / math.sqrt(fan_in)
        # stored pre-transposed as (in, out) so the kernel does x @ W
        w = jax.random.uniform(kw, (fan_in, fan_out), jnp.float32, -bound, bound)
        b = jax.random.uniform(kb, (1, fan_out), jnp.float32, -bound, bound)
        return w, b

    params["w1"], params["b1"] = linear(ks[1], ks[2], 2 * dim, 2 * dim)
    params["w2"], params["b2"] = linear(ks[3], ks[4], 2 * dim, dim)
    params["w3"], params["b3"] = linear(ks[5], ks[6], dim, label_size)
    # BatchNorm affine params: weight=1, bias=0
    params["g1"], params["be1"] = (jnp.ones((1, 2 * dim), jnp.float32),
                                   jnp.zeros((1, 2 * dim), jnp.float32))
    params["g2"], params["be2"] = (jnp.ones((1, dim), jnp.float32),
                                   jnp.zeros((1, dim), jnp.float32))
    params["g3"], params["be3"] = (jnp.ones((1, label_size), jnp.float32),
                                   jnp.zeros((1, label_size), jnp.float32))

    # Pack the 9 small vectors once (init time) into a single (9, 2*dim) slab.
    vec = jnp.zeros((9, 2 * dim), jnp.float32)
    vec = vec.at[0, :2 * dim].set(params["b1"][0])
    vec = vec.at[1, :2 * dim].set(params["g1"][0])
    vec = vec.at[2, :2 * dim].set(params["be1"][0])
    vec = vec.at[3, :dim].set(params["b2"][0])
    vec = vec.at[4, :dim].set(params["g2"][0])
    vec = vec.at[5, :dim].set(params["be2"][0])
    vec = vec.at[6, :label_size].set(params["b3"][0])
    vec = vec.at[7, :label_size].set(params["g3"][0])
    vec = vec.at[8, :label_size].set(params["be3"][0])
    params["vec_slab"] = vec
    return params


# ----------------------------- main -------------------------------------------

if __name__ == "__main__":
    ratio = 0.5
    word_size = 64
    label_size = 6
    dim = 32
    batch = 8
    n_neg = 5

    key = jax.random.PRNGKey(0)
    kp, ks, kt, kn, ky = jax.random.split(key, 5)

    params = init_params(kp, word_size, dim, label_size)
    s = jax.random.randint(ks, (batch,), 0, word_size, dtype=jnp.int32)
    t = jax.random.randint(kt, (batch,), 0, word_size, dtype=jnp.int32)
    ng = jax.random.randint(kn, (batch, n_neg), 0, word_size, dtype=jnp.int32)
    y = jax.random.randint(ky, (batch,), 0, label_size, dtype=jnp.int32)

    fwd = jax.jit(functools.partial(line_forward, ratio=ratio))
    loss = fwd(params, s, t, ng, y)
    loss = jax.block_until_ready(loss)

    ref = line_forward_ref(params, s, t, ng, y, ratio=ratio, dim=dim)
    assert jnp.isfinite(loss), "non-finite loss"
    assert jnp.allclose(loss, ref, rtol=1e-3, atol=1e-3), (loss, ref)

    print("KERNEL_OK")
</pallas_src>

<mosaic_0001>
module attributes {stable_mosaic.version = 11 : i64} {
  func.func @_fused_line_kernel(%arg0: memref<64x1xi32, #tpu.memory_space<vmem>>, %arg1: memref<64x32xf32, #tpu.memory_space<vmem>>, %arg2: memref<64x32xf32, #tpu.memory_space<vmem>>, %arg3: memref<64x64xf32, #tpu.memory_space<vmem>>, %arg4: memref<64x32xf32, #tpu.memory_space<vmem>>, %arg5: memref<32x6xf32, #tpu.memory_space<vmem>>, %arg6: memref<9x64xf32, #tpu.memory_space<vmem>>, %arg7: memref<1x1xf32, #tpu.memory_space<smem>>) attributes {dimension_semantics = [], scalar_prefetch = 0 : i64, scratch_operands = 0 : i64, tpu.core_type = #tpu.core_type<tc>} {
    %c0 = arith.constant 0 : index
    %c0_0 = arith.constant 0 : index
    %0 = vector.load %arg0[%c0, %c0_0] : memref<64x1xi32, #tpu.memory_space<vmem>>, vector<8x1xi32>
    %c8 = arith.constant 8 : index
    %c0_1 = arith.constant 0 : index
    %1 = vector.load %arg0[%c8, %c0_1] : memref<64x1xi32, #tpu.memory_space<vmem>>, vector<8x1xi32>
    %c16 = arith.constant 16 : index
    %c0_2 = arith.constant 0 : index
    %2 = vector.load %arg0[%c16, %c0_2] : memref<64x1xi32, #tpu.memory_space<vmem>>, vector<40x1xi32>
    %c56 = arith.constant 56 : index
    %c0_3 = arith.constant 0 : index
    %3 = vector.load %arg0[%c56, %c0_3] : memref<64x1xi32, #tpu.memory_space<vmem>>, vector<8x1xi32>
    %4 = tpu.iota {dimensions = array<i32: 1>} : vector<8x64xi32>
    %5 = tpu.iota {dimensions = array<i32: 1>} : vector<40x64xi32>
    %6 = vector.broadcast %0 : vector<8x1xi32> to vector<8x64xi32>
    %7 = arith.cmpi eq, %6, %4 : vector<8x64xi32>
    %8 = arith.extui %7 : vector<8x64xi1> to vector<8x64xi32>
    %9 = arith.sitofp %8 : vector<8x64xi32> to vector<8x64xf32>
    %10 = vector.broadcast %1 : vector<8x1xi32> to vector<8x64xi32>
    %11 = arith.cmpi eq, %10, %4 : vector<8x64xi32>
    %12 = arith.extui %11 : vector<8x64xi1> to vector<8x64xi32>
    %13 = arith.sitofp %12 : vector<8x64xi32> to vector<8x64xf32>
    %14 = vector.broadcast %2 : vector<40x1xi32> to vector<40x64xi32>
    %15 = arith.cmpi eq, %14, %5 : vector<40x64xi32>
    %16 = arith.extui %15 : vector<40x64xi1> to vector<40x64xi32>
    %17 = arith.sitofp %16 : vector<40x64xi32> to vector<40x64xf32>
    %c0_4 = arith.constant 0 : index
    %c0_5 = arith.constant 0 : index
    %18 = vector.load %arg1[%c0_4, %c0_5] : memref<64x32xf32, #tpu.memory_space<vmem>>, vector<64x32xf32>
    %c0_6 = arith.constant 0 : index
    %c0_7 = arith.constant 0 : index
    %19 = vector.load %arg2[%c0_6, %c0_7] : memref<64x32xf32, #tpu.memory_space<vmem>>, vector<64x32xf32>
    %cst = arith.constant dense<0.000000e+00> : vector<8x32xf32>
    %20 = tpu.matmul %9, %18, %cst {dimension_numbers = #tpu.dot_dimension_numbers<[1], [0], [0], [1], [0, 0, 1, 1], [], []>} : vector<8x64xf32>, vector<64x32xf32>, vector<8x32xf32> -> vector<8x32xf32>
    %cst_8 = arith.constant dense<0.000000e+00> : vector<8x32xf32>
    %21 = tpu.matmul %13, %18, %cst_8 {dimension_numbers = #tpu.dot_dimension_numbers<[1], [0], [0], [1], [0, 0, 1, 1], [], []>} : vector<8x64xf32>, vector<64x32xf32>, vector<8x32xf32> -> vector<8x32xf32>
    %cst_9 = arith.constant dense<0.000000e+00> : vector<40x32xf32>
    %22 = tpu.matmul %17, %18, %cst_9 {dimension_numbers = #tpu.dot_dimension_numbers<[1], [0], [0], [1], [0, 0, 1, 1], [], []>} : vector<40x64xf32>, vector<64x32xf32>, vector<40x32xf32> -> vector<40x32xf32>
    %cst_10 = arith.constant dense<0.000000e+00> : vector<8x32xf32>
    %23 = tpu.matmul %13, %19, %cst_10 {dimension_numbers = #tpu.dot_dimension_numbers<[1], [0], [0], [1], [0, 0, 1, 1], [], []>} : vector<8x64xf32>, vector<64x32xf32>, vector<8x32xf32> -> vector<8x32xf32>
    %cst_11 = arith.constant dense<0.000000e+00> : vector<40x32xf32>
    %24 = tpu.matmul %17, %19, %cst_11 {dimension_numbers = #tpu.dot_dimension_numbers<[1], [0], [0], [1], [0, 0, 1, 1], [], []>} : vector<40x64xf32>, vector<64x32xf32>, vector<40x32xf32> -> vector<40x32xf32>
    %25 = tpu.iota {dimensions = array<i32: 1>} : vector<8x40xi32>
    %26 = tpu.iota {dimensions = array<i32: 0>} : vector<8x40xi32>
    %c5_i32 = arith.constant 5 : i32
    %27 = vector.broadcast %c5_i32 : i32 to vector<8x40xi32>
    %28 = arith.muli %26, %27 : vector<8x40xi32>
    %29 = arith.cmpi sge, %25, %28 : vector<8x40xi32>
    %c1_i32 = arith.constant 1 : i32
    %30 = vector.broadcast %c1_i32 : i32 to vector<8x40xi32>
    %31 = arith.addi %26, %30 : vector<8x40xi32>
    %c5_i32_12 = arith.constant 5 : i32
    %32 = vector.broadcast %c5_i32_12 : i32 to vector<8x40xi32>
    %33 = arith.muli %31, %32 : vector<8x40xi32>
    %34 = arith.cmpi slt, %25, %33 : vector<8x40xi32>
    %35 = arith.andi %29, %34 : vector<8x40xi1>
    %36 = arith.extui %35 : vector<8x40xi1> to vector<8x40xi32>
    %37 = arith.sitofp %36 : vector<8x40xi32> to vector<8x40xf32>
    %cst_13 = arith.constant dense<0.000000e+00> : vector<8x8xf32>
    %38 = tpu.matmul %20, %21, %cst_13 {dimension_numbers = #tpu.dot_dimension_numbers<[1], [1], [0], [0], [0, 0, 1, 0], [], []>} : vector<8x32xf32>, vector<8x32xf32>, vector<8x8xf32> -> vector<8x8xf32>
    %cst_14 = arith.constant 0.000000e+00 : f32
    %39 = vector.broadcast %cst_14 : f32 to vector<8x8xf32>
    %40 = arith.minimumf %38, %39 : vector<8x8xf32>
    %41 = math.absf %38 : vector<8x8xf32>
    %cst_15 = arith.constant 0.000000e+00 : f32
    %42 = vector.broadcast %cst_15 : f32 to vector<8x8xf32>
    %43 = arith.subf %42, %41 : vector<8x8xf32>
    %44 = math.exp %43 : vector<8x8xf32>
    %cst_16 = arith.constant 1.000000e+00 : f32
    %45 = vector.broadcast %cst_16 : f32 to vector<8x8xf32>
    %46 = arith.addf %45, %44 : vector<8x8xf32>
    %47 = math.log %46 : vector<8x8xf32>
    %48 = arith.subf %40, %47 : vector<8x8xf32>
    %49 = vector.shape_cast %48 : vector<8x8xf32> to vector<1x8x8xf32>
    %cst_17 = arith.constant dense<0.000000e+00> : vector<1xf32>
    %50 = vector.multi_reduction <add>, %49, %cst_17 [1, 2] : vector<1x8x8xf32> to vector<1xf32>
    %51 = vector.shape_cast %50 : vector<1xf32> to vector<1x1x1xf32>
    %52 = vector.extract %51[0, 0, 0] : f32 from vector<1x1x1xf32>
    %cst_18 = arith.constant 6.400000e+01 : f32
    %53 = arith.divf %52, %cst_18 : f32
    %cst_19 = arith.constant dense<0.000000e+00> : vector<8x40xf32>
    %54 = tpu.matmul %20, %22, %cst_19 {dimension_numbers = #tpu.dot_dimension_numbers<[1], [1], [0], [0], [0, 0, 1, 0], [], []>} : vector<8x32xf32>, vector<40x32xf32>, vector<8x40xf32> -> vector<8x40xf32>
    %cst_20 = arith.constant 0.000000e+00 : f32
    %55 = vector.broadcast %cst_20 : f32 to vector<8x40xf32>
    %56 = arith.subf %55, %54 : vector<8x40xf32>
    %cst_21 = arith.constant 0.000000e+00 : f32
    %57 = vector.broadcast %cst_21 : f32 to vector<8x40xf32>
    %58 = arith.minimumf %56, %57 : vector<8x40xf32>
    %59 = math.absf %56 : vector<8x40xf32>
    %cst_22 = arith.constant 0.000000e+00 : f32
    %60 = vector.broadcast %cst_22 : f32 to vector<8x40xf32>
    %61 = arith.subf %60, %59 : vector<8x40xf32>
    %62 = math.exp %61 : vector<8x40xf32>
    %cst_23 = arith.constant 1.000000e+00 : f32
    %63 = vector.broadcast %cst_23 : f32 to vector<8x40xf32>
    %64 = arith.addf %63, %62 : vector<8x40xf32>
    %65 = math.log %64 : vector<8x40xf32>
    %66 = arith.subf %58, %65 : vector<8x40xf32>
    %67 = arith.mulf %66, %37 : vector<8x40xf32>
    %68 = vector.shape_cast %67 : vector<8x40xf32> to vector<1x8x40xf32>
    %cst_24 = arith.constant dense<0.000000e+00> : vector<1xf32>
    %69 = vector.multi_reduction <add>, %68, %cst_24 [1, 2] : vector<1x8x40xf32> to vector<1xf32>
    %70 = vector.shape_cast %69 : vector<1xf32> to vector<1x1x1xf32>
    %71 = vector.extract %70[0, 0, 0] : f32 from vector<1x1x1xf32>
    %cst_25 = arith.constant 1.250000e-01 : f32
    %72 = arith.mulf %71, %cst_25 : f32
    %73 = arith.addf %53, %72 : f32
    %cst_26 = arith.constant 0.000000e+00 : f32
    %74 = arith.subf %cst_26, %73 : f32
    %cst_27 = arith.constant dense<0.000000e+00> : vector<8x8xf32>
    %75 = tpu.matmul %20, %23, %cst_27 {dimension_numbers = #tpu.dot_dimension_numbers<[1], [1], [0], [0], [0, 0, 1, 0], [], []>} : vector<8x32xf32>, vector<8x32xf32>, vector<8x8xf32> -> vector<8x8xf32>
    %cst_28 = arith.constant 0.000000e+00 : f32
    %76 = vector.broadcast %cst_28 : f32 to vector<8x8xf32>
    %77 = arith.minimumf %75, %76 : vector<8x8xf32>
    %78 = math.absf %75 : vector<8x8xf32>
    %cst_29 = arith.constant 0.000000e+00 : f32
    %79 = vector.broadcast %cst_29 : f32 to vector<8x8xf32>
    %80 = arith.subf %79, %78 : vector<8x8xf32>
    %81 = math.exp %80 : vector<8x8xf32>
    %cst_30 = arith.constant 1.000000e+00 : f32
    %82 = vector.broadcast %cst_30 : f32 to vector<8x8xf32>
    %83 = arith.addf %82, %81 : vector<8x8xf32>
    %84 = math.log %83 : vector<8x8xf32>
    %85 = arith.subf %77, %84 : vector<8x8xf32>
    %86 = vector.shape_cast %85 : vector<8x8xf32> to vector<1x8x8xf32>
    %cst_31 = arith.constant dense<0.000000e+00> : vector<1xf32>
    %87 = vector.multi_reduction <add>, %86, %cst_31 [1, 2] : vector<1x8x8xf32> to vector<1xf32>
    %88 = vector.shape_cast %87 : vector<1xf32> to vector<1x1x1xf32>
    %89 = vector.extract %88[0, 0, 0] : f32 from vector<1x1x1xf32>
    %cst_32 = arith.constant 6.400000e+01 : f32
    %90 = arith.divf %89, %cst_32 : f32
    %cst_33 = arith.constant dense<0.000000e+00> : vector<8x40xf32>
    %91 = tpu.matmul %20, %24, %cst_33 {dimension_numbers = #tpu.dot_dimension_numbers<[1], [1], [0], [0], [0, 0, 1, 0], [], []>} : vector<8x32xf32>, vector<40x32xf32>, vector<8x40xf32> -> vector<8x40xf32>
    %cst_34 = arith.constant 0.000000e+00 : f32
    %92 = vector.broadcast %cst_34 : f32 to vector<8x40xf32>
    %93 = arith.subf %92, %91 : vector<8x40xf32>
    %cst_35 = arith.constant 0.000000e+00 : f32
    %94 = vector.broadcast %cst_35 : f32 to vector<8x40xf32>
    %95 = arith.minimumf %93, %94 : vector<8x40xf32>
    %96 = math.absf %93 : vector<8x40xf32>
    %cst_36 = arith.constant 0.000000e+00 : f32
    %97 = vector.broadcast %cst_36 : f32 to vector<8x40xf32>
    %98 = arith.subf %97, %96 : vector<8x40xf32>
    %99 = math.exp %98 : vector<8x40xf32>
    %cst_37 = arith.constant 1.000000e+00 : f32
    %100 = vector.broadcast %cst_37 : f32 to vector<8x40xf32>
    %101 = arith.addf %100, %99 : vector<8x40xf32>
    %102 = math.log %101 : vector<8x40xf32>
    %103 = arith.subf %95, %102 : vector<8x40xf32>
    %104 = arith.mulf %103, %37 : vector<8x40xf32>
    %105 = vector.shape_cast %104 : vector<8x40xf32> to vector<1x8x40xf32>
    %cst_38 = arith.constant dense<0.000000e+00> : vector<1xf32>
    %106 = vector.multi_reduction <add>, %105, %cst_38 [1, 2] : vector<1x8x40xf32> to vector<1xf32>
    %107 = vector.shape_cast %106 : vector<1xf32> to vector<1x1x1xf32>
    %108 = vector.extract %107[0, 0, 0] : f32 from vector<1x1x1xf32>
    %cst_39 = arith.constant 1.250000e-01 : f32
    %109 = arith.mulf %108, %cst_39 : f32
    %110 = arith.addf %90, %109 : f32
    %cst_40 = arith.constant 0.000000e+00 : f32
    %111 = arith.subf %cst_40, %110 : f32
    %112 = arith.addf %74, %111 : f32
    %c0_41 = arith.constant 0 : index
    %c0_42 = arith.constant 0 : index
    %113 = vector.load %arg6[%c0_41, %c0_42] : memref<9x64xf32, #tpu.memory_space<vmem>>, vector<1x64xf32>
    %c1 = arith.constant 1 : index
    %c0_43 = arith.constant 0 : index
    %114 = vector.load %arg6[%c1, %c0_43] : memref<9x64xf32, #tpu.memory_space<vmem>>, vector<1x64xf32>
    %c2 = arith.constant 2 : index
    %c0_44 = arith.constant 0 : index
    %115 = vector.load %arg6[%c2, %c0_44] : memref<9x64xf32, #tpu.memory_space<vmem>>, vector<1x64xf32>
    %c3 = arith.constant 3 : index
    %c0_45 = arith.constant 0 : index
    %116 = vector.load %arg6[%c3, %c0_45] : memref<9x64xf32, #tpu.memory_space<vmem>>, vector<1x32xf32>
    %c4 = arith.constant 4 : index
    %c0_46 = arith.constant 0 : index
    %117 = vector.load %arg6[%c4, %c0_46] : memref<9x64xf32, #tpu.memory_space<vmem>>, vector<1x32xf32>
    %c5 = arith.constant 5 : index
    %c0_47 = arith.constant 0 : index
    %118 = vector.load %arg6[%c5, %c0_47] : memref<9x64xf32, #tpu.memory_space<vmem>>, vector<1x32xf32>
    %c6 = arith.constant 6 : index
    %c0_48 = arith.constant 0 : index
    %119 = vector.load %arg6[%c6, %c0_48] : memref<9x64xf32, #tpu.memory_space<vmem>>, vector<1x6xf32>
    %c7 = arith.constant 7 : index
    %c0_49 = arith.constant 0 : index
    %120 = vector.load %arg6[%c7, %c0_49] : memref<9x64xf32, #tpu.memory_space<vmem>>, vector<1x6xf32>
    %c8_50 = arith.constant 8 : index
    %c0_51 = arith.constant 0 : index
    %121 = vector.load %arg6[%c8_50, %c0_51] : memref<9x64xf32, #tpu.memory_space<vmem>>, vector<1x6xf32>
    %122 = tpu.concatenate %20, %21 in 1 : vector<8x32xf32>, vector<8x32xf32> -> vector<8x64xf32>
    %c0_52 = arith.constant 0 : index
    %c0_53 = arith.constant 0 : index
    %123 = vector.load %arg3[%c0_52, %c0_53] : memref<64x64xf32, #tpu.memory_space<vmem>>, vector<64x64xf32>
    %cst_54 = arith.constant dense<0.000000e+00> : vector<8x64xf32>
    %124 = tpu.matmul %122, %123, %cst_54 {dimension_numbers = #tpu.dot_dimension_numbers<[1], [0], [0], [1], [0, 0, 1, 1], [], []>} : vector<8x64xf32>, vector<64x64xf32>, vector<8x64xf32> -> vector<8x64xf32>
    %125 = vector.broadcast %113 : vector<1x64xf32> to vector<8x64xf32>
    %126 = arith.addf %124, %125 : vector<8x64xf32>
    %cst_55 = arith.constant dense<0.000000e+00> : vector<64xf32>
    %127 = vector.multi_reduction <add>, %126, %cst_55 [0] : vector<8x64xf32> to vector<64xf32>
    %128 = vector.shape_cast %127 : vector<64xf32> to vector<1x64xf32>
    %cst_56 = arith.constant 8.000000e+00 : f32
    %129 = vector.broadcast %cst_56 : f32 to vector<1x64xf32>
    %130 = arith.divf %128, %129 : vector<1x64xf32>
    %131 = vector.broadcast %130 : vector<1x64xf32> to vector<8x64xf32>
    %132 = arith.subf %126, %131 : vector<8x64xf32>
    %133 = arith.mulf %132, %132 : vector<8x64xf32>
    %cst_57 = arith.constant dense<0.000000e+00> : vector<64xf32>
    %134 = vector.multi_reduction <add>, %133, %cst_57 [0] : vector<8x64xf32> to vector<64xf32>
    %135 = vector.shape_cast %134 : vector<64xf32> to vector<1x64xf32>
    %cst_58 = arith.constant 8.000000e+00 : f32
    %136 = vector.broadcast %cst_58 : f32 to vector<1x64xf32>
    %137 = arith.divf %135, %136 : vector<1x64xf32>
    %138 = vector.broadcast %130 : vector<1x64xf32> to vector<8x64xf32>
    %139 = arith.subf %126, %138 : vector<8x64xf32>
    %cst_59 = arith.constant 6.400000e+01 : f32
    %140 = vector.broadcast %cst_59 : f32 to vector<1x64xf32>
    %141 = arith.addf %137, %140 : vector<1x64xf32>
    %142 = math.rsqrt %141 : vector<1x64xf32>
    %143 = vector.broadcast %142 : vector<1x64xf32> to vector<8x64xf32>
    %144 = arith.mulf %139, %143 : vector<8x64xf32>
    %145 = vector.broadcast %114 : vector<1x64xf32> to vector<8x64xf32>
    %146 = arith.mulf %144, %145 : vector<8x64xf32>
    %147 = vector.broadcast %115 : vector<1x64xf32> to vector<8x64xf32>
    %148 = arith.addf %146, %147 : vector<8x64xf32>
    %cst_60 = arith.constant 0.000000e+00 : f32
    %149 = vector.broadcast %cst_60 : f32 to vector<8x64xf32>
    %150 = arith.maximumf %148, %149 : vector<8x64xf32>
    %c0_61 = arith.constant 0 : index
    %c0_62 = arith.constant 0 : index
    %151 = vector.load %arg4[%c0_61, %c0_62] : memref<64x32xf32, #tpu.memory_space<vmem>>, vector<64x32xf32>
    %cst_63 = arith.constant dense<0.000000e+00> : vector<8x32xf32>
    %152 = tpu.matmul %150, %151, %cst_63 {dimension_numbers = #tpu.dot_dimension_numbers<[1], [0], [0], [1], [0, 0, 1, 1], [], []>} : vector<8x64xf32>, vector<64x32xf32>, vector<8x32xf32> -> vector<8x32xf32>
    %153 = vector.broadcast %116 : vector<1x32xf32> to vector<8x32xf32>
    %154 = arith.addf %152, %153 : vector<8x32xf32>
    %cst_64 = arith.constant dense<0.000000e+00> : vector<32xf32>
    %155 = vector.multi_reduction <add>, %154, %cst_64 [0] : vector<8x32xf32> to vector<32xf32>
    %156 = vector.shape_cast %155 : vector<32xf32> to vector<1x32xf32>
    %cst_65 = arith.constant 8.000000e+00 : f32
    %157 = vector.broadcast %cst_65 : f32 to vector<1x32xf32>
    %158 = arith.divf %156, %157 : vector<1x32xf32>
    %159 = vector.broadcast %158 : vector<1x32xf32> to vector<8x32xf32>
    %160 = arith.subf %154, %159 : vector<8x32xf32>
    %161 = arith.mulf %160, %160 : vector<8x32xf32>
    %cst_66 = arith.constant dense<0.000000e+00> : vector<32xf32>
    %162 = vector.multi_reduction <add>, %161, %cst_66 [0] : vector<8x32xf32> to vector<32xf32>
    %163 = vector.shape_cast %162 : vector<32xf32> to vector<1x32xf32>
    %cst_67 = arith.constant 8.000000e+00 : f32
    %164 = vector.broadcast %cst_67 : f32 to vector<1x32xf32>
    %165 = arith.divf %163, %164 : vector<1x32xf32>
    %166 = vector.broadcast %158 : vector<1x32xf32> to vector<8x32xf32>
    %167 = arith.subf %154, %166 : vector<8x32xf32>
    %cst_68 = arith.constant 3.200000e+01 : f32
    %168 = vector.broadcast %cst_68 : f32 to vector<1x32xf32>
    %169 = arith.addf %165, %168 : vector<1x32xf32>
    %170 = math.rsqrt %169 : vector<1x32xf32>
    %171 = vector.broadcast %170 : vector<1x32xf32> to vector<8x32xf32>
    %172 = arith.mulf %167, %171 : vector<8x32xf32>
    %173 = vector.broadcast %117 : vector<1x32xf32> to vector<8x32xf32>
    %174 = arith.mulf %172, %173 : vector<8x32xf32>
    %175 = vector.broadcast %118 : vector<1x32xf32> to vector<8x32xf32>
    %176 = arith.addf %174, %175 : vector<8x32xf32>
    %cst_69 = arith.constant 0.000000e+00 : f32
    %177 = vector.broadcast %cst_69 : f32 to vector<8x32xf32>
    %178 = arith.maximumf %176, %177 : vector<8x32xf32>
    %c0_70 = arith.constant 0 : index
    %c0_71 = arith.constant 0 : index
    %179 = vector.load %arg5[%c0_70, %c0_71] : memref<32x6xf32, #tpu.memory_space<vmem>>, vector<32x6xf32>
    %cst_72 = arith.constant dense<0.000000e+00> : vector<8x6xf32>
    %180 = tpu.matmul %178, %179, %cst_72 {dimension_numbers = #tpu.dot_dimension_numbers<[1], [0], [0], [1], [0, 0, 1, 1], [], []>} : vector<8x32xf32>, vector<32x6xf32>, vector<8x6xf32> -> vector<8x6xf32>
    %181 = vector.broadcast %119 : vector<1x6xf32> to vector<8x6xf32>
    %182 = arith.addf %180, %181 : vector<8x6xf32>
    %cst_73 = arith.constant dense<0.000000e+00> : vector<6xf32>
    %183 = vector.multi_reduction <add>, %182, %cst_73 [0] : vector<8x6xf32> to vector<6xf32>
    %184 = vector.shape_cast %183 : vector<6xf32> to vector<1x6xf32>
    %cst_74 = arith.constant 8.000000e+00 : f32
    %185 = vector.broadcast %cst_74 : f32 to vector<1x6xf32>
    %186 = arith.divf %184, %185 : vector<1x6xf32>
    %187 = vector.broadcast %186 : vector<1x6xf32> to vector<8x6xf32>
    %188 = arith.subf %182, %187 : vector<8x6xf32>
    %189 = arith.mulf %188, %188 : vector<8x6xf32>
    %cst_75 = arith.constant dense<0.000000e+00> : vector<6xf32>
    %190 = vector.multi_reduction <add>, %189, %cst_75 [0] : vector<8x6xf32> to vector<6xf32>
    %191 = vector.shape_cast %190 : vector<6xf32> to vector<1x6xf32>
    %cst_76 = arith.constant 8.000000e+00 : f32
    %192 = vector.broadcast %cst_76 : f32 to vector<1x6xf32>
    %193 = arith.divf %191, %192 : vector<1x6xf32>
    %194 = vector.broadcast %186 : vector<1x6xf32> to vector<8x6xf32>
    %195 = arith.subf %182, %194 : vector<8x6xf32>
    %cst_77 = arith.constant 3.200000e+01 : f32
    %196 = vector.broadcast %cst_77 : f32 to vector<1x6xf32>
    %197 = arith.addf %193, %196 : vector<1x6xf32>
    %198 = math.rsqrt %197 : vector<1x6xf32>
    %199 = vector.broadcast %198 : vector<1x6xf32> to vector<8x6xf32>
    %200 = arith.mulf %195, %199 : vector<8x6xf32>
    %201 = vector.broadcast %120 : vector<1x6xf32> to vector<8x6xf32>
    %202 = arith.mulf %200, %201 : vector<8x6xf32>
    %203 = vector.broadcast %121 : vector<1x6xf32> to vector<8x6xf32>
    %204 = arith.addf %202, %203 : vector<8x6xf32>
    %cst_78 = arith.constant 0.000000e+00 : f32
    %205 = vector.broadcast %cst_78 : f32 to vector<8x6xf32>
    %206 = arith.maximumf %204, %205 : vector<8x6xf32>
    %cst_79 = arith.constant dense<0xFF800000> : vector<8xf32>
    %207 = vector.multi_reduction <maximumf>, %206, %cst_79 [1] : vector<8x6xf32> to vector<8xf32>
    %208 = vector.shape_cast %207 : vector<8xf32> to vector<8x1xf32>
    %209 = vector.broadcast %208 : vector<8x1xf32> to vector<8x6xf32>
    %210 = arith.subf %206, %209 : vector<8x6xf32>
    %211 = math.exp %210 : vector<8x6xf32>
    %cst_80 = arith.constant dense<0.000000e+00> : vector<8xf32>
    %212 = vector.multi_reduction <add>, %211, %cst_80 [1] : vector<8x6xf32> to vector<8xf32>
    %213 = vector.shape_cast %212 : vector<8xf32> to vector<8x1xf32>
    %214 = math.log %213 : vector<8x1xf32>
    %215 = arith.addf %214, %208 : vector<8x1xf32>
    %216 = tpu.iota {dimensions = array<i32: 1>} : vector<8x6xi32>
    %217 = vector.broadcast %3 : vector<8x1xi32> to vector<8x6xi32>
    %218 = arith.cmpi eq, %217, %216 : vector<8x6xi32>
    %219 = arith.extui %218 : vector<8x6xi1> to vector<8x6xi32>
    %220 = arith.sitofp %219 : vector<8x6xi32> to vector<8x6xf32>
    %221 = arith.mulf %206, %220 : vector<8x6xf32>
    %cst_81 = arith.constant dense<0.000000e+00> : vector<8xf32>
    %222 = vector.multi_reduction <add>, %221, %cst_81 [1] : vector<8x6xf32> to vector<8xf32>
    %223 = vector.shape_cast %222 : vector<8xf32> to vector<8x1xf32>
    %224 = arith.subf %215, %223 : vector<8x1xf32>
    %225 = vector.shape_cast %224 : vector<8x1xf32> to vector<1x8x1xf32>
    %cst_82 = arith.constant dense<0.000000e+00> : vector<1xf32>
    %226 = vector.multi_reduction <add>, %225, %cst_82 [1, 2] : vector<1x8x1xf32> to vector<1xf32>
    %227 = vector.shape_cast %226 : vector<1xf32> to vector<1x1x1xf32>
    %228 = vector.extract %227[0, 0, 0] : f32 from vector<1x1x1xf32>
    %cst_83 = arith.constant 8.000000e+00 : f32
    %229 = arith.divf %228, %cst_83 : f32
    %cst_84 = arith.constant 5.000000e-01 : f32
    %230 = arith.mulf %cst_84, %112 : f32
    %231 = arith.addf %230, %229 : f32
    %c0_85 = arith.constant 0 : index
    %c0_86 = arith.constant 0 : index
    %232 = memref.load %arg7[%c0_85, %c0_86] : memref<1x1xf32, #tpu.memory_space<smem>>
    memref.store %231, %arg7[%c0_85, %c0_86] : memref<1x1xf32, #tpu.memory_space<smem>>
    return
  }
}

</mosaic_0001>

<llo_original>
// kernel: line_forward.1
$region0: #{line_forward.1}
  #allocation0 [shape = 'u32[]', space=smem, size = 0x4, offset = 0x4, fixed_abs, tag = 'smem constant byte address 0x4 - core index']
  #allocation1 [shape = 'u32[144,128]{1,0:T(1,128)}', space=vmem, size = 0x12000, scoped, tag = 'internal scratch']
  %s0 = inlined_call_operand.vmem [shape: s32[64,1], index: 0, kind: input, shape index: {}]
  %s1 = inlined_call_operand.vmem [shape: f32[64,32], index: 1, kind: input, shape index: {}]
  %s2 = inlined_call_operand.vmem [shape: f32[64,32], index: 2, kind: input, shape index: {}]
  %s3 = inlined_call_operand.vmem [shape: f32[64,64], index: 3, kind: input, shape index: {}]
  %s4 = inlined_call_operand.vmem [shape: f32[64,32], index: 4, kind: input, shape index: {}]
  %s5 = inlined_call_operand.vmem [shape: f32[32,6], index: 5, kind: input, shape index: {}]
  %s6 = inlined_call_operand.vmem [shape: f32[9,64], index: 6, kind: input, shape index: {}]
  %s7 = inlined_call_operand.hbm [shape: f32[1,1], index: 7, kind: output, shape index: {}]
  %s8 = sld [smem:[#allocation0]]
  $region38: #{line_forward.1} parent=0
    _
  %s10 = ssub.s32 1, %s8
  %s11 = scalar_select 0, %s10, %s8
  $region1: #{line_forward.1} parent=0
    #allocation2 [shape = 'u8[512]{0}', space=smem, size = 0x200, scoped, tag = 'output window, operand 0, single buffered']
    #allocation3 [shape = 's32[1]{0}', space=sflag, size = 0x4, scoped, tag = 'scoped memory for line_forward.1']
    %12 = vsyncpa [#allocation3], 0
    // Predicated region
    $region2: #{line_forward.1} parent=1 // pred_check
      _
    $region3: #{line_forward.1} parent=1 // pred_check_branch
      %14 = sbr.rel (0) target = $region5
    $region4: #{line_forward.1} parent=1 // pred_region
      _
    $region5: #{line_forward.1} parent=1 // pred_fallthru
      _
    // Predicated region
    $region6: #{line_forward.1} parent=1 // pred_check
      _
    $region7: #{line_forward.1} parent=1 // pred_check_branch
      %16 = sbr.rel (0) target = $region9
    $region8: #{line_forward.1} parent=1 // pred_region
      _
    $region9: #{line_forward.1} parent=1 // pred_fallthru
      _
    // Predicated region
    $region10: #{line_forward.1} parent=1 // pred_check
      _
    $region11: #{line_forward.1} parent=1 // pred_check_branch
      %18 = sbr.rel (0) target = $region13
    $region12: #{line_forward.1} parent=1 // pred_region
      _
    $region13: #{line_forward.1} parent=1 // pred_fallthru
      _
    // Predicated region
    $region14: #{line_forward.1} parent=1 // pred_check
      _
    $region15: #{line_forward.1} parent=1 // pred_check_branch
      %20 = sbr.rel (0) target = $region17
    $region16: #{line_forward.1} parent=1 // pred_region
      _
    $region17: #{line_forward.1} parent=1 // pred_fallthru
      _
    // Predicated region
    $region18: #{line_forward.1} parent=1 // pred_check
      _
    $region19: #{line_forward.1} parent=1 // pred_check_branch
      %22 = sbr.rel (0) target = $region21
    $region20: #{line_forward.1} parent=1 // pred_region
      _
    $region21: #{line_forward.1} parent=1 // pred_fallthru
      _
    // Predicated region
    $region22: #{line_forward.1} parent=1 // pred_check
      _
    $region23: #{line_forward.1} parent=1 // pred_check_branch
      %24 = sbr.rel (0) target = $region25
    $region24: #{line_forward.1} parent=1 // pred_region
      _
    $region25: #{line_forward.1} parent=1 // pred_fallthru
      _
    // Predicated region
    $region26: #{line_forward.1} parent=1 // pred_check
      _
    $region27: #{line_forward.1} parent=1 // pred_check_branch
      %26 = sbr.rel (0) target = $region29
    $region28: #{line_forward.1} parent=1 // pred_region
      _
    $region29: #{line_forward.1} parent=1 // pred_fallthru
      _
    %v27 = vld [vmem:[%s0] sm:$0xff]
    %v28 = vld [vmem:[%s0 + $0x8] sm:$0xff]
    %v29 = vld [vmem:[%s0 + $0x10] sm:$0xff]
    %v30 = vld [vmem:[%s0 + $0x18] sm:$0xff]
    %v31 = vld [vmem:[%s0 + $0x20] sm:$0xff]
    %v32 = vld [vmem:[%s0 + $0x28] sm:$0xff]
    %v33 = vld [vmem:[%s0 + $0x30] sm:$0xff]
    %v34 = vld [vmem:[%s0 + $0x38] sm:$0xff]
    %v35 = vlaneseq
    %v36 = vand.u32 %v35, 127
    %37 = vset.pattern.permute.xlu0 0
    %38 = vperm.xlu0 %37, %v27
    %v39 = vpop.permute.xlu0 %38
    %vm40 = vcmp.eq.s32.totalorder %v39, %v36
    %v41 = vsel %vm40, 1, 0
    %v42 = vcvt.s32.f32 %v41
    %43 = vset.pattern.permute.xlu0 0
    %44 = vperm.xlu0 %43, %v28
    %v45 = vpop.permute.xlu0 %44
    %vm46 = vcmp.eq.s32.totalorder %v45, %v36
    %v47 = vsel %vm46, 1, 0
    %v48 = vcvt.s32.f32 %v47
    %49 = vset.pattern.permute.xlu0 0
    %50 = vperm.xlu0 %49, %v29
    %v51 = vpop.permute.xlu0 %50
    %52 = vset.pattern.permute.xlu0 0
    %53 = vperm.xlu0 %52, %v30
    %v54 = vpop.permute.xlu0 %53
    %55 = vset.pattern.permute.xlu0 0
    %56 = vperm.xlu0 %55, %v31
    %v57 = vpop.permute.xlu0 %56
    %58 = vset.pattern.permute.xlu0 0
    %59 = vperm.xlu0 %58, %v32
    %v60 = vpop.permute.xlu0 %59
    %61 = vset.pattern.permute.xlu0 0
    %62 = vperm.xlu0 %61, %v33
    %v63 = vpop.permute.xlu0 %62
    %vm64 = vcmp.eq.s32.totalorder %v51, %v36
    %vm65 = vcmp.eq.s32.totalorder %v54, %v36
    %vm66 = vcmp.eq.s32.totalorder %v57, %v36
    %vm67 = vcmp.eq.s32.totalorder %v60, %v36
    %vm68 = vcmp.eq.s32.totalorder %v63, %v36
    %v69 = vsel %vm64, 1, 0
    %v70 = vsel %vm65, 1, 0
    %v71 = vsel %vm66, 1, 0
    %v72 = vsel %vm67, 1, 0
    %v73 = vsel %vm68, 1, 0
    %v74 = vcvt.s32.f32 %v69
    %v75 = vcvt.s32.f32 %v70
    %v76 = vcvt.s32.f32 %v71
    %v77 = vcvt.s32.f32 %v72
    %v78 = vcvt.s32.f32 %v73
    %v79 = vld [vmem:[%s1] sm:$0xff]
    %v80 = vld [vmem:[%s1 + $0x8] sm:$0xff]
    %v81 = vld [vmem:[%s1 + $0x10] sm:$0xff]
    %v82 = vld [vmem:[%s1 + $0x18] sm:$0xff]
    %v83 = vld [vmem:[%s1 + $0x20] sm:$0xff]
    %v84 = vld [vmem:[%s1 + $0x28] sm:$0xff]
    %v85 = vld [vmem:[%s1 + $0x30] sm:$0xff]
    %v86 = vld [vmem:[%s1 + $0x38] sm:$0xff]
    %v87 = vld [vmem:[%s2] sm:$0xff]
    %v88 = vld [vmem:[%s2 + $0x8] sm:$0xff]
    %v89 = vld [vmem:[%s2 + $0x10] sm:$0xff]
    %v90 = vld [vmem:[%s2 + $0x18] sm:$0xff]
    %v91 = vld [vmem:[%s2 + $0x20] sm:$0xff]
    %v92 = vld [vmem:[%s2 + $0x28] sm:$0xff]
    %v93 = vld [vmem:[%s2 + $0x30] sm:$0xff]
    %v94 = vld [vmem:[%s2 + $0x38] sm:$0xff]
    %vm95 = vcmask 523264
    %v97 = vsel %vm95, %v42, 0
    %99 = vmatprep.subr.mxu0 0.0
    %100 = vmatpush1.msra.mxu0 %v79
    %101 = vmatprep.subr.mxu0 0.0
    %102 = vmatpush1.msra.mxu0 %v80
    %103 = vmatprep.subr.mxu0 0.0
    %104 = vmatpush1.msra.mxu0 %v81
    %105 = vmatprep.subr.mxu0 0.0
    %106 = vmatpush1.msra.mxu0 %v82
    %107 = vmatprep.subr.mxu0 0.0
    %108 = vmatpush1.msra.mxu0 %v83
    %109 = vmatprep.subr.mxu0 0.0
    %110 = vmatpush1.msra.mxu0 %v84
    %111 = vmatprep.subr.mxu0 0.0
    %112 = vmatpush1.msra.mxu0 %v85
    %113 = vmatprep.subr.mxu0 0.0
    %114 = vmatpush1.msra.mxu0 %v86
    %115 = vmatprep.subr.mxu0 0.0
    %116 = vmatpush1.msra.mxu0 0.0
    %117 = vmatprep.subr.mxu0 0.0
    %118 = vmatpush1.msra.mxu0 0.0
    %119 = vmatprep.subr.mxu0 0.0
    %120 = vmatpush1.msra.mxu0 0.0
    %121 = vmatprep.subr.mxu0 0.0
    %122 = vmatpush1.msra.mxu0 0.0
    %123 = vmatprep.subr.mxu0 0.0
    %124 = vmatpush1.msra.mxu0 0.0
    %125 = vmatprep.subr.mxu0 0.0
    %126 = vmatpush1.msra.mxu0 0.0
    %127 = vmatprep.subr.mxu0 0.0
    %128 = vmatpush1.msra.mxu0 0.0
    %129 = vmatprep.subr.mxu0 0.0
    %130 = vmatpush1.msra.mxu0 0.0
    %131 = vmatprep.subr.mxu0 0.0
    %132 = vmatpush1.msra.mxu0 0.0
    %133 = vmatprep.subr.mxu0 0.0
    %134 = vmatpush1.msra.mxu0 0.0
    %135 = vmatprep.subr.mxu0 0.0
    %136 = vmatpush1.msra.mxu0 0.0
    %137 = vmatprep.subr.mxu0 0.0
    %138 = vmatpush1.msra.mxu0 0.0
    %139 = vmatprep.subr.mxu0 0.0
    %140 = vmatpush1.msra.mxu0 0.0
    %141 = vmatprep.subr.mxu0 0.0
    %142 = vmatpush1.msra.mxu0 0.0
    %143 = vmatprep.subr.mxu0 0.0
    %144 = vmatpush1.msra.mxu0 0.0
    %145 = vmatprep.subr.mxu0 0.0
    %146 = vmatpush1.msra.mxu0 0.0
    %147 = vmatprep.subr.mxu0 0.0
    %148 = vmatpush1.msra.mxu0 0.0
    %149 = vmatprep.subr.mxu0 0.0
    %150 = vmatpush1.msra.mxu0 0.0
    %151 = vmatprep.subr.mxu0 0.0
    %152 = vmatpush1.msra.mxu0 0.0
    %153 = vmatprep.subr.mxu0 0.0
    %154 = vmatpush1.msra.mxu0 0.0
    %155 = vmatprep.subr.mxu0 0.0
    %156 = vmatpush1.msra.mxu0 0.0
    %157 = vmatprep.subr.mxu0 0.0
    %158 = vmatpush1.msra.mxu0 0.0
    %159 = vmatprep.subr.mxu0 0.0
    %160 = vmatpush1.msra.mxu0 0.0
    %161 = vmatprep.subr.mxu0 0.0
    %162 = vmatpush1.msra.mxu0 0.0
    %163 = vmatprep.mubr.f32.mxu0 0.0
    %164 = vmatmul.mubr.f32.gmra.mrb[0].mxu0 %v97
    %v165 = vpop.f32.mrb[0].mxu0
    %v166 = vadd.f32 0.0, %v165
    %v167 = vpop.f32.mrb[0].mxu0
    %168 = vdwg.mxu0
    %v170 = vsel %vm95, %v48, 0
    %172 = vmatprep.subr.mxu0 0.0
    %173 = vmatpush1.msra.mxu0 %v79
    %174 = vmatprep.subr.mxu0 0.0
    %175 = vmatpush1.msra.mxu0 %v80
    %176 = vmatprep.subr.mxu0 0.0
    %177 = vmatpush1.msra.mxu0 %v81
    %178 = vmatprep.subr.mxu0 0.0
    %179 = vmatpush1.msra.mxu0 %v82
    %180 = vmatprep.subr.mxu0 0.0
    %181 = vmatpush1.msra.mxu0 %v83
    %182 = vmatprep.subr.mxu0 0.0
    %183 = vmatpush1.msra.mxu0 %v84
    %184 = vmatprep.subr.mxu0 0.0
    %185 = vmatpush1.msra.mxu0 %v85
    %186 = vmatprep.subr.mxu0 0.0
    %187 = vmatpush1.msra.mxu0 %v86
    %188 = vmatprep.subr.mxu0 0.0
    %189 = vmatpush1.msra.mxu0 0.0
    %190 = vmatprep.subr.mxu0 0.0
    %191 = vmatpush1.msra.mxu0 0.0
    %192 = vmatprep.subr.mxu0 0.0
    %193 = vmatpush1.msra.mxu0 0.0
    %194 = vmatprep.subr.mxu0 0.0
    %195 = vmatpush1.msra.mxu0 0.0
    %196 = vmatprep.subr.mxu0 0.0
    %197 = vmatpush1.msra.mxu0 0.0
    %198 = vmatprep.subr.mxu0 0.0
    %199 = vmatpush1.msra.mxu0 0.0
    %200 = vmatprep.subr.mxu0 0.0
    %201 = vmatpush1.msra.mxu0 0.0
    %202 = vmatprep.subr.mxu0 0.0
    %203 = vmatpush1.msra.mxu0 0.0
    %204 = vmatprep.subr.mxu0 0.0
    %205 = vmatpush1.msra.mxu0 0.0
    %206 = vmatprep.subr.mxu0 0.0
    %207 = vmatpush1.msra.mxu0 0.0
    %208 = vmatprep.subr.mxu0 0.0
    %209 = vmatpush1.msra.mxu0 0.0
    %210 = vmatprep.subr.mxu0 0.0
    %211 = vmatpush1.msra.mxu0 0.0
    %212 = vmatprep.subr.mxu0 0.0
    %213 = vmatpush1.msra.mxu0 0.0
    %214 = vmatprep.subr.mxu0 0.0
    %215 = vmatpush1.msra.mxu0 0.0
    %216 = vmatprep.subr.mxu0 0.0
    %217 = vmatpush1.msra.mxu0 0.0
    %218 = vmatprep.subr.mxu0 0.0
    %219 = vmatpush1.msra.mxu0 0.0
    %220 = vmatprep.subr.mxu0 0.0
    %221 = vmatpush1.msra.mxu0 0.0
    %222 = vmatprep.subr.mxu0 0.0
    %223 = vmatpush1.msra.mxu0 0.0
    %224 = vmatprep.subr.mxu0 0.0
    %225 = vmatpush1.msra.mxu0 0.0
    %226 = vmatprep.subr.mxu0 0.0
    %227 = vmatpush1.msra.mxu0 0.0
    %228 = vmatprep.subr.mxu0 0.0
    %229 = vmatpush1.msra.mxu0 0.0
    %230 = vmatprep.subr.mxu0 0.0
    %231 = vmatpush1.msra.mxu0 0.0
    %232 = vmatprep.subr.mxu0 0.0
    %233 = vmatpush1.msra.mxu0 0.0
    %234 = vmatprep.subr.mxu0 0.0
    %235 = vmatpush1.msra.mxu0 0.0
    %236 = vmatprep.mubr.f32.mxu0 0.0
    %237 = vmatmul.mubr.f32.gmra.mrb[0].mxu0 %v170
    %v238 = vpop.f32.mrb[0].mxu0
    %v239 = vadd.f32 0.0, %v238
    %v240 = vpop.f32.mrb[0].mxu0
    %241 = vdwg.mxu0
    %v243 = vsel %vm95, %v74, 0
    %v246 = vsel %vm95, %v75, 0
    %v249 = vsel %vm95, %v76, 0
    %v252 = vsel %vm95, %v77, 0
    %v255 = vsel %vm95, %v78, 0
    %257 = vmatprep.subr.mxu0 0.0
    %258 = vmatpush1.msra.mxu0 %v79
    %259 = vmatprep.subr.mxu0 0.0
    %260 = vmatpush1.msra.mxu0 %v80
    %261 = vmatprep.subr.mxu0 0.0
    %262 = vmatpush1.msra.mxu0 %v81
    %263 = vmatprep.subr.mxu0 0.0
    %264 = vmatpush1.msra.mxu0 %v82
    %265 = vmatprep.subr.mxu0 0.0
    %266 = vmatpush1.msra.mxu0 %v83
    %267 = vmatprep.subr.mxu0 0.0
    %268 = vmatpush1.msra.mxu0 %v84
    %269 = vmatprep.subr.mxu0 0.0
    %270 = vmatpush1.msra.mxu0 %v85
    %271 = vmatprep.subr.mxu0 0.0
    %272 = vmatpush1.msra.mxu0 %v86
    %273 = vmatprep.subr.mxu0 0.0
    %274 = vmatpush1.msra.mxu0 0.0
    %275 = vmatprep.subr.mxu0 0.0
    %276 = vmatpush1.msra.mxu0 0.0
    %277 = vmatprep.subr.mxu0 0.0
    %278 = vmatpush1.msra.mxu0 0.0
    %279 = vmatprep.subr.mxu0 0.0
    %280 = vmatpush1.msra.mxu0 0.0
    %281 = vmatprep.subr.mxu0 0.0
    %282 = vmatpush1.msra.mxu0 0.0
    %283 = vmatprep.subr.mxu0 0.0
    %284 = vmatpush1.msra.mxu0 0.0
    %285 = vmatprep.subr.mxu0 0.0
    %286 = vmatpush1.msra.mxu0 0.0
    %287 = vmatprep.subr.mxu0 0.0
    %288 = vmatpush1.msra.mxu0 0.0
    %289 = vmatprep.subr.mxu0 0.0
    %290 = vmatpush1.msra.mxu0 0.0
    %291 = vmatprep.subr.mxu0 0.0
    %292 = vmatpush1.msra.mxu0 0.0
    %293 = vmatprep.subr.mxu0 0.0
    %294 = vmatpush1.msra.mxu0 0.0
    %295 = vmatprep.subr.mxu0 0.0
    %296 = vmatpush1.msra.mxu0 0.0
    %297 = vmatprep.subr.mxu0 0.0
    %298 = vmatpush1.msra.mxu0 0.0
    %299 = vmatprep.subr.mxu0 0.0
    %300 = vmatpush1.msra.mxu0 0.0
    %301 = vmatprep.subr.mxu0 0.0
    %302 = vmatpush1.msra.mxu0 0.0
    %303 = vmatprep.subr.mxu0 0.0
    %304 = vmatpush1.msra.mxu0 0.0
    %305 = vmatprep.subr.mxu0 0.0
    %306 = vmatpush1.msra.mxu0 0.0
    %307 = vmatprep.subr.mxu0 0.0
    %308 = vmatpush1.msra.mxu0 0.0
    %309 = vmatprep.subr.mxu0 0.0
    %310 = vmatpush1.msra.mxu0 0.0
    %311 = vmatprep.subr.mxu0 0.0
    %312 = vmatpush1.msra.mxu0 0.0
    %313 = vmatprep.subr.mxu0 0.0
    %314 = vmatpush1.msra.mxu0 0.0
    %315 = vmatprep.subr.mxu0 0.0
    %316 = vmatpush1.msra.mxu0 0.0
    %317 = vmatprep.subr.mxu0 0.0
    %318 = vmatpush1.msra.mxu0 0.0
    %319 = vmatprep.subr.mxu0 0.0
    %320 = vmatpush1.msra.mxu0 0.0
    %321 = vmatprep.mubr.f32.mxu0 0.0
    %322 = vmatmul.mubr.f32.gmra.mrb[0].mxu0 %v243
    %v323 = vpop.f32.mrb[0].mxu0
    %v324 = vadd.f32 0.0, %v323
    %v325 = vpop.f32.mrb[0].mxu0
    %326 = vmatprep.mubr.f32.mxu0 0.0
    %327 = vmatmul.mubr.f32.gmra.mrb[0].mxu0 %v246
    %v328 = vpop.f32.mrb[0].mxu0
    %v329 = vadd.f32 0.0, %v328
    %v330 = vpop.f32.mrb[0].mxu0
    %331 = vmatprep.mubr.f32.mxu0 0.0
    %332 = vmatmul.mubr.f32.gmra.mrb[0].mxu0 %v249
    %v333 = vpop.f32.mrb[0].mxu0
    %v334 = vadd.f32 0.0, %v333
    %v335 = vpop.f32.mrb[0].mxu0
    %336 = vmatprep.mubr.f32.mxu0 0.0
    %337 = vmatmul.mubr.f32.gmra.mrb[0].mxu0 %v252
    %v338 = vpop.f32.mrb[0].mxu0
    %v339 = vadd.f32 0.0, %v338
    %v340 = vpop.f32.mrb[0].mxu0
    %341 = vmatprep.mubr.f32.mxu0 0.0
    %342 = vmatmul.mubr.f32.gmra.mrb[0].mxu0 %v255
    %v343 = vpop.f32.mrb[0].mxu0
    %v344 = vadd.f32 0.0, %v343
    %v345 = vpop.f32.mrb[0].mxu0
    %346 = vdwg.mxu0
    %347 = vmatprep.subr.mxu0 0.0
    %348 = vmatpush1.msra.mxu0 %v87
    %349 = vmatprep.subr.mxu0 0.0
    %350 = vmatpush1.msra.mxu0 %v88
    %351 = vmatprep.subr.mxu0 0.0
    %352 = vmatpush1.msra.mxu0 %v89
    %353 = vmatprep.subr.mxu0 0.0
    %354 = vmatpush1.msra.mxu0 %v90
    %355 = vmatprep.subr.mxu0 0.0
    %356 = vmatpush1.msra.mxu0 %v91
    %357 = vmatprep.subr.mxu0 0.0
    %358 = vmatpush1.msra.mxu0 %v92
    %359 = vmatprep.subr.mxu0 0.0
    %360 = vmatpush1.msra.mxu0 %v93
    %361 = vmatprep.subr.mxu0 0.0
    %362 = vmatpush1.msra.mxu0 %v94
    %363 = vmatprep.subr.mxu0 0.0
    %364 = vmatpush1.msra.mxu0 0.0
    %365 = vmatprep.subr.mxu0 0.0
    %366 = vmatpush1.msra.mxu0 0.0
    %367 = vmatprep.subr.mxu0 0.0
    %368 = vmatpush1.msra.mxu0 0.0
    %369 = vmatprep.subr.mxu0 0.0
    %370 = vmatpush1.msra.mxu0 0.0
    %371 = vmatprep.subr.mxu0 0.0
    %372 = vmatpush1.msra.mxu0 0.0
    %373 = vmatprep.subr.mxu0 0.0
    %374 = vmatpush1.msra.mxu0 0.0
    %375 = vmatprep.subr.mxu0 0.0
    %376 = vmatpush1.msra.mxu0 0.0
    %377 = vmatprep.subr.mxu0 0.0
    %378 = vmatpush1.msra.mxu0 0.0
    %379 = vmatprep.subr.mxu0 0.0
    %380 = vmatpush1.msra.mxu0 0.0
    %381 = vmatprep.subr.mxu0 0.0
    %382 = vmatpush1.msra.mxu0 0.0
    %383 = vmatprep.subr.mxu0 0.0
    %384 = vmatpush1.msra.mxu0 0.0
    %385 = vmatprep.subr.mxu0 0.0
    %386 = vmatpush1.msra.mxu0 0.0
    %387 = vmatprep.subr.mxu0 0.0
    %388 = vmatpush1.msra.mxu0 0.0
    %389 = vmatprep.subr.mxu0 0.0
    %390 = vmatpush1.msra.mxu0 0.0
    %391 = vmatprep.subr.mxu0 0.0
    %392 = vmatpush1.msra.mxu0 0.0
    %393 = vmatprep.subr.mxu0 0.0
    %394 = vmatpush1.msra.mxu0 0.0
    %395 = vmatprep.subr.mxu0 0.0
    %396 = vmatpush1.msra.mxu0 0.0
    %397 = vmatprep.subr.mxu0 0.0
    %398 = vmatpush1.msra.mxu0 0.0
    %399 = vmatprep.subr.mxu0 0.0
    %400 = vmatpush1.msra.mxu0 0.0
    %401 = vmatprep.subr.mxu0 0.0
    %402 = vmatpush1.msra.mxu0 0.0
    %403 = vmatprep.subr.mxu0 0.0
    %404 = vmatpush1.msra.mxu0 0.0
    %405 = vmatprep.subr.mxu0 0.0
    %406 = vmatpush1.msra.mxu0 0.0
    %407 = vmatprep.subr.mxu0 0.0
    %408 = vmatpush1.msra.mxu0 0.0
    %409 = vmatprep.subr.mxu0 0.0
    %410 = vmatpush1.msra.mxu0 0.0
    %411 = vmatprep.mubr.f32.mxu0 0.0
    %412 = vmatmul.mubr.f32.gmra.mrb[0].mxu0 %v170
    %v413 = vpop.f32.mrb[0].mxu0
    %v414 = vadd.f32 0.0, %v413
    %v415 = vpop.f32.mrb[0].mxu0
    %416 = vdwg.mxu0
    %417 = vmatprep.subr.mxu0 0.0
    %418 = vmatpush1.msra.mxu0 %v87
    %419 = vmatprep.subr.mxu0 0.0
    %420 = vmatpush1.msra.mxu0 %v88
    %421 = vmatprep.subr.mxu0 0.0
    %422 = vmatpush1.msra.mxu0 %v89
    %423 = vmatprep.subr.mxu0 0.0
    %424 = vmatpush1.msra.mxu0 %v90
    %425 = vmatprep.subr.mxu0 0.0
    %426 = vmatpush1.msra.mxu0 %v91
    %427 = vmatprep.subr.mxu0 0.0
    %428 = vmatpush1.msra.mxu0 %v92
    %429 = vmatprep.subr.mxu0 0.0
    %430 = vmatpush1.msra.mxu0 %v93
    %431 = vmatprep.subr.mxu0 0.0
    %432 = vmatpush1.msra.mxu0 %v94
    %433 = vmatprep.subr.mxu0 0.0
    %434 = vmatpush1.msra.mxu0 0.0
    %435 = vmatprep.subr.mxu0 0.0
    %436 = vmatpush1.msra.mxu0 0.0
    %437 = vmatprep.subr.mxu0 0.0
    %438 = vmatpush1.msra.mxu0 0.0
    %439 = vmatprep.subr.mxu0 0.0
    %440 = vmatpush1.msra.mxu0 0.0
    %441 = vmatprep.subr.mxu0 0.0
    %442 = vmatpush1.msra.mxu0 0.0
    %443 = vmatprep.subr.mxu0 0.0
    %444 = vmatpush1.msra.mxu0 0.0
    %445 = vmatprep.subr.mxu0 0.0
    %446 = vmatpush1.msra.mxu0 0.0
    %447 = vmatprep.subr.mxu0 0.0
    %448 = vmatpush1.msra.mxu0 0.0
    %449 = vmatprep.subr.mxu0 0.0
    %450 = vmatpush1.msra.mxu0 0.0
    %451 = vmatprep.subr.mxu0 0.0
    %452 = vmatpush1.msra.mxu0 0.0
    %453 = vmatprep.subr.mxu0 0.0
    %454 = vmatpush1.msra.mxu0 0.0
    %455 = vmatprep.subr.mxu0 0.0
    %456 = vmatpush1.msra.mxu0 0.0
    %457 = vmatprep.subr.mxu0 0.0
    %458 = vmatpush1.msra.mxu0 0.0
    %459 = vmatprep.subr.mxu0 0.0
    %460 = vmatpush1.msra.mxu0 0.0
    %461 = vmatprep.subr.mxu0 0.0
    %462 = vmatpush1.msra.mxu0 0.0
    %463 = vmatprep.subr.mxu0 0.0
    %464 = vmatpush1.msra.mxu0 0.0
    %465 = vmatprep.subr.mxu0 0.0
    %466 = vmatpush1.msra.mxu0 0.0
    %467 = vmatprep.subr.mxu0 0.0
    %468 = vmatpush1.msra.mxu0 0.0
    %469 = vmatprep.subr.mxu0 0.0
    %470 = vmatpush1.msra.mxu0 0.0
    %471 = vmatprep.subr.mxu0 0.0
    %472 = vmatpush1.msra.mxu0 0.0
    %473 = vmatprep.subr.mxu0 0.0
    %474 = vmatpush1.msra.mxu0 0.0
    %475 = vmatprep.subr.mxu0 0.0
    %476 = vmatpush1.msra.mxu0 0.0
    %477 = vmatprep.subr.mxu0 0.0
    %478 = vmatpush1.msra.mxu0 0.0
    %479 = vmatprep.subr.mxu0 0.0
    %480 = vmatpush1.msra.mxu0 0.0
    %481 = vmatprep.mubr.f32.mxu0 0.0
    %482 = vmatmul.mubr.f32.gmra.mrb[0].mxu0 %v243
    %v483 = vpop.f32.mrb[0].mxu0
    %v484 = vadd.f32 0.0, %v483
    %v485 = vpop.f32.mrb[0].mxu0
    %486 = vmatprep.mubr.f32.mxu0 0.0
    %487 = vmatmul.mubr.f32.gmra.mrb[0].mxu0 %v246
    %v488 = vpop.f32.mrb[0].mxu0
    %v489 = vadd.f32 0.0, %v488
    %v490 = vpop.f32.mrb[0].mxu0
    %491 = vmatprep.mubr.f32.mxu0 0.0
    %492 = vmatmul.mubr.f32.gmra.mrb[0].mxu0 %v249
    %v493 = vpop.f32.mrb[0].mxu0
    %v494 = vadd.f32 0.0, %v493
    %v495 = vpop.f32.mrb[0].mxu0
    %496 = vmatprep.mubr.f32.mxu0 0.0
    %497 = vmatmul.mubr.f32.gmra.mrb[0].mxu0 %v252
    %v498 = vpop.f32.mrb[0].mxu0
    %v499 = vadd.f32 0.0, %v498
    %v500 = vpop.f32.mrb[0].mxu0
    %501 = vmatprep.mubr.f32.mxu0 0.0
    %502 = vmatmul.mubr.f32.gmra.mrb[0].mxu0 %v255
    %v503 = vpop.f32.mrb[0].mxu0
    %v504 = vadd.f32 0.0, %v503
    %v505 = vpop.f32.mrb[0].mxu0
    %506 = vdwg.mxu0
    %v507 = vlaneseq
    %v508 = vshrl.u32 %v507, 7
    %v509 = vmul.u32 %v508, 5
    %vm510 = vcmp.ge.s32.totalorder %v36, %v509
    %v511 = vadd.s32 %v508, 1
    %v512 = vmul.u32 %v511, 5
    %vm513 = vcmp.lt.s32.totalorder %v36, %v512
    %vm514 = vmand %vm510, %vm513
    %v515 = vsel %vm514, 1, 0
    %v516 = vcvt.s32.f32 %v515
    %vm517 = vcmask 261120
    %v519 = vsel %vm517, %v166, 0
    %v522 = vsel %vm517, %v239, 0
    %524 = vmatprep.subr.mxu0 0.0
    %525 = vmatpush1.xpose.msra.mxu0 %v522
    %526 = vmatprep.subr.mxu0 0.0
    %527 = vmatpush1.xpose.msra.mxu0 0.0
    %528 = vmatprep.subr.mxu0 0.0
    %529 = vmatpush1.xpose.msra.mxu0 0.0
    %530 = vmatprep.subr.mxu0 0.0
    %531 = vmatpush1.xpose.msra.mxu0 0.0
    %532 = vmatprep.subr.mxu0 0.0
    %533 = vmatpush1.xpose.msra.mxu0 0.0
    %534 = vmatprep.subr.mxu0 0.0
    %535 = vmatpush1.xpose.msra.mxu0 0.0
    %536 = vmatprep.subr.mxu0 0.0
    %537 = vmatpush1.xpose.msra.mxu0 0.0
    %538 = vmatprep.subr.mxu0 0.0
    %539 = vmatpush1.xpose.msra.mxu0 0.0
    %540 = vmatprep.subr.mxu0 0.0
    %541 = vmatpush1.xpose.msra.mxu0 0.0
    %542 = vmatprep.subr.mxu0 0.0
    %543 = vmatpush1.xpose.msra.mxu0 0.0
    %544 = vmatprep.subr.mxu0 0.0
    %545 = vmatpush1.xpose.msra.mxu0 0.0
    %546 = vmatprep.subr.mxu0 0.0
    %547 = vmatpush1.xpose.msra.mxu0 0.0
    %548 = vmatprep.subr.mxu0 0.0
    %549 = vmatpush1.xpose.msra.mxu0 0.0
    %550 = vmatprep.subr.mxu0 0.0
    %551 = vmatpush1.xpose.msra.mxu0 0.0
    %552 = vmatprep.subr.mxu0 0.0
    %553 = vmatpush1.xpose.msra.mxu0 0.0
    %554 = vmatprep.subr.mxu0 0.0
    %555 = vmatpush1.xpose.msra.mxu0 0.0
    %556 = vmatprep.subr.mxu0 0.0
    %557 = vmatpush1.xpose.msra.mxu0 0.0
    %558 = vmatprep.subr.mxu0 0.0
    %559 = vmatpush1.xpose.msra.mxu0 0.0
    %560 = vmatprep.subr.mxu0 0.0
    %561 = vmatpush1.xpose.msra.mxu0 0.0
    %562 = vmatprep.subr.mxu0 0.0
    %563 = vmatpush1.xpose.msra.mxu0 0.0
    %564 = vmatprep.subr.mxu0 0.0
    %565 = vmatpush1.xpose.msra.mxu0 0.0
    %566 = vmatprep.subr.mxu0 0.0
    %567 = vmatpush1.xpose.msra.mxu0 0.0
    %568 = vmatprep.subr.mxu0 0.0
    %569 = vmatpush1.xpose.msra.mxu0 0.0
    %570 = vmatprep.subr.mxu0 0.0
    %571 = vmatpush1.xpose.msra.mxu0 0.0
    %572 = vmatprep.subr.mxu0 0.0
    %573 = vmatpush1.xpose.msra.mxu0 0.0
    %574 = vmatprep.subr.mxu0 0.0
    %575 = vmatpush1.xpose.msra.mxu0 0.0
    %576 = vmatprep.subr.mxu0 0.0
    %577 = vmatpush1.xpose.msra.mxu0 0.0
    %578 = vmatprep.subr.mxu0 0.0
    %579 = vmatpush1.xpose.msra.mxu0 0.0
    %580 = vmatprep.subr.mxu0 0.0
    %581 = vmatpush1.xpose.msra.mxu0 0.0
    %582 = vmatprep.subr.mxu0 0.0
    %583 = vmatpush1.xpose.msra.mxu0 0.0
    %584 = vmatprep.subr.mxu0 0.0
    %585 = vmatpush1.xpose.msra.mxu0 0.0
    %586 = vmatprep.subr.mxu0 0.0
    %587 = vmatpush1.xpose.msra.mxu0 0.0
    %588 = vmatprep.mubr.f32.mxu0 0.0
    %589 = vmatmul.mubr.f32.gmra.mrb[0].mxu0 %v519
    %v590 = vpop.f32.mrb[0].mxu0
    %v591 = vadd.f32 0.0, %v590
    %v592 = vpop.f32.mrb[0].mxu0
    %593 = vdwg.mxu0
    %v594 = vmin.f32 %v591, 0.0
    %v595 = vand.u32 2147483647, %v591
    %v596 = vsub.f32 0.0, %v595
    %v597 = vmul.f32 %v596, 1.442695
    %v598 = vpow.pop %v597
    %v599 = vadd.f32 %v598, 1.0
    %v600 = vlog2.pop %v599
    %v601 = vmul.f32 %v600, 0.6931472
    %v602 = vsub.f32 %v594, %v601
    %vm603 = vcmask 64512
    %v604 = vsel %vm603, %v602, 0.0
    %605 = vadd.xlane.f32.xlu0 %v604
    %v606 = vpop.xlane.xlu0 %605
    %v607 = vrot.slane %v606, 4
    %v608 = vadd.f32 %v606, %v607
    %v609 = vrot.slane %v608, 2
    %v610 = vadd.f32 %v608, %v609
    %v611 = vrot.slane %v610, 1
    %v612 = vadd.f32 %v610, %v611
    %s613 = vtos %v612
    %v614 = vrcp.pop 64.0
    %s615 = vtos %v614
    %s616 = smul.f32 %s613, %s615
    %v618 = vsel %vm517, %v324, 0
    %v621 = vsel %vm517, %v329, 0
    %v624 = vsel %vm517, %v334, 0
    %v627 = vsel %vm517, %v339, 0
    %v630 = vsel %vm517, %v344, 0
    %632 = vmatprep.subr.mxu0 0.0
    %633 = vmatpush1.xpose.msra.mxu0 %v618
    %634 = vmatprep.subr.mxu0 0.0
    %635 = vmatpush1.xpose.msra.mxu0 %v621
    %636 = vmatprep.subr.mxu0 0.0
    %637 = vmatpush1.xpose.msra.mxu0 %v624
    %638 = vmatprep.subr.mxu0 0.0
    %639 = vmatpush1.xpose.msra.mxu0 %v627
    %640 = vmatprep.subr.mxu0 0.0
    %641 = vmatpush1.xpose.msra.mxu0 %v630
    %642 = vmatprep.subr.mxu0 0.0
    %643 = vmatpush1.xpose.msra.mxu0 0.0
    %644 = vmatprep.subr.mxu0 0.0
    %645 = vmatpush1.xpose.msra.mxu0 0.0
    %646 = vmatprep.subr.mxu0 0.0
    %647 = vmatpush1.xpose.msra.mxu0 0.0
    %648 = vmatprep.subr.mxu0 0.0
    %649 = vmatpush1.xpose.msra.mxu0 0.0
    %650 = vmatprep.subr.mxu0 0.0
    %651 = vmatpush1.xpose.msra.mxu0 0.0
    %652 = vmatprep.subr.mxu0 0.0
    %653 = vmatpush1.xpose.msra.mxu0 0.0
    %654 = vmatprep.subr.mxu0 0.0
    %655 = vmatpush1.xpose.msra.mxu0 0.0
    %656 = vmatprep.subr.mxu0 0.0
    %657 = vmatpush1.xpose.msra.mxu0 0.0
    %658 = vmatprep.subr.mxu0 0.0
    %659 = vmatpush1.xpose.msra.mxu0 0.0
    %660 = vmatprep.subr.mxu0 0.0
    %661 = vmatpush1.xpose.msra.mxu0 0.0
    %662 = vmatprep.subr.mxu0 0.0
    %663 = vmatpush1.xpose.msra.mxu0 0.0
    %664 = vmatprep.subr.mxu0 0.0
    %665 = vmatpush1.xpose.msra.mxu0 0.0
    %666 = vmatprep.subr.mxu0 0.0
    %667 = vmatpush1.xpose.msra.mxu0 0.0
    %668 = vmatprep.subr.mxu0 0.0
    %669 = vmatpush1.xpose.msra.mxu0 0.0
    %670 = vmatprep.subr.mxu0 0.0
    %671 = vmatpush1.xpose.msra.mxu0 0.0
    %672 = vmatprep.subr.mxu0 0.0
    %673 = vmatpush1.xpose.msra.mxu0 0.0
    %674 = vmatprep.subr.mxu0 0.0
    %675 = vmatpush1.xpose.msra.mxu0 0.0
    %676 = vmatprep.subr.mxu0 0.0
    %677 = vmatpush1.xpose.msra.mxu0 0.0
    %678 = vmatprep.subr.mxu0 0.0
    %679 = vmatpush1.xpose.msra.mxu0 0.0
    %680 = vmatprep.subr.mxu0 0.0
    %681 = vmatpush1.xpose.msra.mxu0 0.0
    %682 = vmatprep.subr.mxu0 0.0
    %683 = vmatpush1.xpose.msra.mxu0 0.0
    %684 = vmatprep.subr.mxu0 0.0
    %685 = vmatpush1.xpose.msra.mxu0 0.0
    %686 = vmatprep.subr.mxu0 0.0
    %687 = vmatpush1.xpose.msra.mxu0 0.0
    %688 = vmatprep.subr.mxu0 0.0
    %689 = vmatpush1.xpose.msra.mxu0 0.0
    %690 = vmatprep.subr.mxu0 0.0
    %691 = vmatpush1.xpose.msra.mxu0 0.0
    %692 = vmatprep.subr.mxu0 0.0
    %693 = vmatpush1.xpose.msra.mxu0 0.0
    %694 = vmatprep.subr.mxu0 0.0
    %695 = vmatpush1.xpose.msra.mxu0 0.0
    %696 = vmatprep.mubr.f32.mxu0 0.0
    %697 = vmatmul.mubr.f32.gmra.mrb[0].mxu0 %v519
    %v698 = vpop.f32.mrb[0].mxu0
    %v699 = vadd.f32 0.0, %v698
    %v700 = vpop.f32.mrb[0].mxu0
    %701 = vdwg.mxu0
    %v702 = vsub.f32 0.0, %v699
    %v703 = vmin.f32 %v702, 0.0
    %v704 = vand.u32 2147483647, %v702
    %v705 = vsub.f32 0.0, %v704
    %v706 = vmul.f32 %v705, 1.442695
    %v707 = vpow.pop %v706
    %v708 = vadd.f32 %v707, 1.0
    %v709 = vlog2.pop %v708
    %v710 = vmul.f32 %v709, 0.6931472
    %v711 = vsub.f32 %v703, %v710
    %v712 = vmul.f32 %v711, %v516
    %vm713 = vcmask 326656
    %v714 = vsel %vm713, %v712, 0.0
    %715 = vadd.xlane.f32.xlu0 %v714
    %v716 = vpop.xlane.xlu0 %715
    %v717 = vrot.slane %v716, 4
    %v718 = vadd.f32 %v716, %v717
    %v719 = vrot.slane %v718, 2
    %v720 = vadd.f32 %v718, %v719
    %v721 = vrot.slane %v720, 1
    %v722 = vadd.f32 %v720, %v721
    %s723 = vtos %v722
    %s724 = smul.f32 %s723, 0.125
    %s725 = sadd.f32 %s616, %s724
    %s726 = ssub.f32 0.0, %s725
    %v728 = vsel %vm517, %v414, 0
    %730 = vmatprep.subr.mxu0 0.0
    %731 = vmatpush1.xpose.msra.mxu0 %v728
    %732 = vmatprep.subr.mxu0 0.0
    %733 = vmatpush1.xpose.msra.mxu0 0.0
    %734 = vmatprep.subr.mxu0 0.0
    %735 = vmatpush1.xpose.msra.mxu0 0.0
    %736 = vmatprep.subr.mxu0 0.0
    %737 = vmatpush1.xpose.msra.mxu0 0.0
    %738 = vmatprep.subr.mxu0 0.0
    %739 = vmatpush1.xpose.msra.mxu0 0.0
    %740 = vmatprep.subr.mxu0 0.0
    %741 = vmatpush1.xpose.msra.mxu0 0.0
    %742 = vmatprep.subr.mxu0 0.0
    %743 = vmatpush1.xpose.msra.mxu0 0.0
    %744 = vmatprep.subr.mxu0 0.0
    %745 = vmatpush1.xpose.msra.mxu0 0.0
    %746 = vmatprep.subr.mxu0 0.0
    %747 = vmatpush1.xpose.msra.mxu0 0.0
    %748 = vmatprep.subr.mxu0 0.0
    %749 = vmatpush1.xpose.msra.mxu0 0.0
    %750 = vmatprep.subr.mxu0 0.0
    %751 = vmatpush1.xpose.msra.mxu0 0.0
    %752 = vmatprep.subr.mxu0 0.0
    %753 = vmatpush1.xpose.msra.mxu0 0.0
    %754 = vmatprep.subr.mxu0 0.0
    %755 = vmatpush1.xpose.msra.mxu0 0.0
    %756 = vmatprep.subr.mxu0 0.0
    %757 = vmatpush1.xpose.msra.mxu0 0.0
    %758 = vmatprep.subr.mxu0 0.0
    %759 = vmatpush1.xpose.msra.mxu0 0.0
    %760 = vmatprep.subr.mxu0 0.0
    %761 = vmatpush1.xpose.msra.mxu0 0.0
    %762 = vmatprep.subr.mxu0 0.0
    %763 = vmatpush1.xpose.msra.mxu0 0.0
    %764 = vmatprep.subr.mxu0 0.0
    %765 = vmatpush1.xpose.msra.mxu0 0.0
    %766 = vmatprep.subr.mxu0 0.0
    %767 = vmatpush1.xpose.msra.mxu0 0.0
    %768 = vmatprep.subr.mxu0 0.0
    %769 = vmatpush1.xpose.msra.mxu0 0.0
    %770 = vmatprep.subr.mxu0 0.0
    %771 = vmatpush1.xpose.msra.mxu0 0.0
    %772 = vmatprep.subr.mxu0 0.0
    %773 = vmatpush1.xpose.msra.mxu0 0.0
    %774 = vmatprep.subr.mxu0 0.0
    %775 = vmatpush1.xpose.msra.mxu0 0.0
    %776 = vmatprep.subr.mxu0 0.0
    %777 = vmatpush1.xpose.msra.mxu0 0.0
    %778 = vmatprep.subr.mxu0 0.0
    %779 = vmatpush1.xpose.msra.mxu0 0.0
    %780 = vmatprep.subr.mxu0 0.0
    %781 = vmatpush1.xpose.msra.mxu0 0.0
    %782 = vmatprep.subr.mxu0 0.0
    %783 = vmatpush1.xpose.msra.mxu0 0.0
    %784 = vmatprep.subr.mxu0 0.0
    %785 = vmatpush1.xpose.msra.mxu0 0.0
    %786 = vmatprep.subr.mxu0 0.0
    %787 = vmatpush1.xpose.msra.mxu0 0.0
    %788 = vmatprep.subr.mxu0 0.0
    %789 = vmatpush1.xpose.msra.mxu0 0.0
    %790 = vmatprep.subr.mxu0 0.0
    %791 = vmatpush1.xpose.msra.mxu0 0.0
    %792 = vmatprep.subr.mxu0 0.0
    %793 = vmatpush1.xpose.msra.mxu0 0.0
    %794 = vmatprep.mubr.f32.mxu0 0.0
    %795 = vmatmul.mubr.f32.gmra.mrb[0].mxu0 %v519
    %v796 = vpop.f32.mrb[0].mxu0
    %v797 = vadd.f32 0.0, %v796
    %v798 = vpop.f32.mrb[0].mxu0
    %799 = vdwg.mxu0
    %v800 = vmin.f32 %v797, 0.0
    %v801 = vand.u32 2147483647, %v797
    %v802 = vsub.f32 0.0, %v801
    %v803 = vmul.f32 %v802, 1.442695
    %v804 = vpow.pop %v803
    %v805 = vadd.f32 %v804, 1.0
    %v806 = vlog2.pop %v805
    %v807 = vmul.f32 %v806, 0.6931472
    %v808 = vsub.f32 %v800, %v807
    %v809 = vsel %vm603, %v808, 0.0
    %810 = vadd.xlane.f32.xlu0 %v809
    %v811 = vpop.xlane.xlu0 %810
    %v812 = vrot.slane %v811, 4
    %v813 = vadd.f32 %v811, %v812
    %v814 = vrot.slane %v813, 2
    %v815 = vadd.f32 %v813, %v814
    %v816 = vrot.slane %v815, 1
    %v817 = vadd.f32 %v815, %v816
    %s818 = vtos %v817
    %v819 = vrcp.pop 64.0
    %s820 = vtos %v819
    %s821 = smul.f32 %s818, %s820
    %v823 = vsel %vm517, %v484, 0
    %v826 = vsel %vm517, %v489, 0
    %v829 = vsel %vm517, %v494, 0
    %v832 = vsel %vm517, %v499, 0
    %v835 = vsel %vm517, %v504, 0
    %837 = vmatprep.subr.mxu0 0.0
    %838 = vmatpush1.xpose.msra.mxu0 %v823
    %839 = vmatprep.subr.mxu0 0.0
    %840 = vmatpush1.xpose.msra.mxu0 %v826
    %841 = vmatprep.subr.mxu0 0.0
    %842 = vmatpush1.xpose.msra.mxu0 %v829
    %843 = vmatprep.subr.mxu0 0.0
    %844 = vmatpush1.xpose.msra.mxu0 %v832
    %845 = vmatprep.subr.mxu0 0.0
    %846 = vmatpush1.xpose.msra.mxu0 %v835
    %847 = vmatprep.subr.mxu0 0.0
    %848 = vmatpush1.xpose.msra.mxu0 0.0
    %849 = vmatprep.subr.mxu0 0.0
    %850 = vmatpush1.xpose.msra.mxu0 0.0
    %851 = vmatprep.subr.mxu0 0.0
    %852 = vmatpush1.xpose.msra.mxu0 0.0
    %853 = vmatprep.subr.mxu0 0.0
    %854 = vmatpush1.xpose.msra.mxu0 0.0
    %855 = vmatprep.subr.mxu0 0.0
    %856 = vmatpush1.xpose.msra.mxu0 0.0
    %857 = vmatprep.subr.mxu0 0.0
    %858 = vmatpush1.xpose.msra.mxu0 0.0
    %859 = vmatprep.subr.mxu0 0.0
    %860 = vmatpush1.xpose.msra.mxu0 0.0
    %861 = vmatprep.subr.mxu0 0.0
    %862 = vmatpush1.xpose.msra.mxu0 0.0
    %863 = vmatprep.subr.mxu0 0.0
    %864 = vmatpush1.xpose.msra.mxu0 0.0
    %865 = vmatprep.subr.mxu0 0.0
    %866 = vmatpush1.xpose.msra.mxu0 0.0
    %867 = vmatprep.subr.mxu0 0.0
    %868 = vmatpush1.xpose.msra.mxu0 0.0
    %869 = vmatprep.subr.mxu0 0.0
    %870 = vmatpush1.xpose.msra.mxu0 0.0
    %871 = vmatprep.subr.mxu0 0.0
    %872 = vmatpush1.xpose.msra.mxu0 0.0
    %873 = vmatprep.subr.mxu0 0.0
    %874 = vmatpush1.xpose.msra.mxu0 0.0
    %875 = vmatprep.subr.mxu0 0.0
    %876 = vmatpush1.xpose.msra.mxu0 0.0
    %877 = vmatprep.subr.mxu0 0.0
    %878 = vmatpush1.xpose.msra.mxu0 0.0
    %879 = vmatprep.subr.mxu0 0.0
    %880 = vmatpush1.xpose.msra.mxu0 0.0
    %881 = vmatprep.subr.mxu0 0.0
    %882 = vmatpush1.xpose.msra.mxu0 0.0
    %883 = vmatprep.subr.mxu0 0.0
    %884 = vmatpush1.xpose.msra.mxu0 0.0
    %885 = vmatprep.subr.mxu0 0.0
    %886 = vmatpush1.xpose.msra.mxu0 0.0
    %887 = vmatprep.subr.mxu0 0.0
    %888 = vmatpush1.xpose.msra.mxu0 0.0
    %889 = vmatprep.subr.mxu0 0.0
    %890 = vmatpush1.xpose.msra.mxu0 0.0
    %891 = vmatprep.subr.mxu0 0.0
    %892 = vmatpush1.xpose.msra.mxu0 0.0
    %893 = vmatprep.subr.mxu0 0.0
    %894 = vmatpush1.xpose.msra.mxu0 0.0
    %895 = vmatprep.subr.mxu0 0.0
    %896 = vmatpush1.xpose.msra.mxu0 0.0
    %897 = vmatprep.subr.mxu0 0.0
    %898 = vmatpush1.xpose.msra.mxu0 0.0
    %899 = vmatprep.subr.mxu0 0.0
    %900 = vmatpush1.xpose.msra.mxu0 0.0
    %901 = vmatprep.mubr.f32.mxu0 0.0
    %902 = vmatmul.mubr.f32.gmra.mrb[0].mxu0 %v519
    %v903 = vpop.f32.mrb[0].mxu0
    %v904 = vadd.f32 0.0, %v903
    %v905 = vpop.f32.mrb[0].mxu0
    %906 = vdwg.mxu0
    %v907 = vsub.f32 0.0, %v904
    %v908 = vmin.f32 %v907, 0.0
    %v909 = vand.u32 2147483647, %v907
    %v910 = vsub.f32 0.0, %v909
    %v911 = vmul.f32 %v910, 1.442695
    %v912 = vpow.pop %v911
    %v913 = vadd.f32 %v912, 1.0
    %v914 = vlog2.pop %v913
    %v915 = vmul.f32 %v914, 0.6931472
    %v916 = vsub.f32 %v908, %v915
    %v917 = vmul.f32 %v916, %v516
    %v918 = vsel %vm713, %v917, 0.0
    %919 = vadd.xlane.f32.xlu0 %v918
    %v920 = vpop.xlane.xlu0 %919
    %v921 = vrot.slane %v920, 4
    %v922 = vadd.f32 %v920, %v921
    %v923 = vrot.slane %v922, 2
    %v924 = vadd.f32 %v922, %v923
    %v925 = vrot.slane %v924, 1
    %v926 = vadd.f32 %v924, %v925
    %s927 = vtos %v926
    %s928 = smul.f32 %s927, 0.125
    %s929 = sadd.f32 %s821, %s928
    %s930 = ssub.f32 0.0, %s929
    %s931 = sadd.f32 %s726, %s930
    %v932 = vld [vmem:[%s6] sm:$0x1]
    %v933 = vld [vmem:[%s6 + $0x1] sm:$0x1]
    %v934 = vld [vmem:[%s6 + $0x2] sm:$0x1]
    %v935 = vld [vmem:[%s6 + $0x3] sm:$0x1]
    %v936 = vld [vmem:[%s6 + $0x4] sm:$0x1]
    %v937 = vld [vmem:[%s6 + $0x5] sm:$0x1]
    %v938 = vld [vmem:[%s6 + $0x6] sm:$0x1]
    %v939 = vld [vmem:[%s6 + $0x7] sm:$0x1]
    %v940 = vld [vmem:[%s6 + $0x8] sm:$0x1]
    %941 = vrot.lane.b32.xlu0 %v239, 32
    %v942 = vpop.permute.xlu0 %941
    %v944 = vsel %vm517, %v166, %v942
    %v945 = vld [vmem:[%s3] sm:$0xff]
    %v946 = vld [vmem:[%s3 + $0x8] sm:$0xff]
    %v947 = vld [vmem:[%s3 + $0x10] sm:$0xff]
    %v948 = vld [vmem:[%s3 + $0x18] sm:$0xff]
    %v949 = vld [vmem:[%s3 + $0x20] sm:$0xff]
    %v950 = vld [vmem:[%s3 + $0x28] sm:$0xff]
    %v951 = vld [vmem:[%s3 + $0x30] sm:$0xff]
    %v952 = vld [vmem:[%s3 + $0x38] sm:$0xff]
    %v953 = vlaneseq
    %v954 = vshrl.u32 %v953, 7
    %v955 = vsub.s32 0, %v954
    %v956 = vrot.slane %v932, %v955
    %v958 = vsel %vm95, %v944, 0
    %960 = vmatprep.subr.mxu0 0.0
    %961 = vmatpush1.msra.mxu0 %v945
    %962 = vmatprep.subr.mxu0 0.0
    %963 = vmatpush1.msra.mxu0 %v946
    %964 = vmatprep.subr.mxu0 0.0
    %965 = vmatpush1.msra.mxu0 %v947
    %966 = vmatprep.subr.mxu0 0.0
    %967 = vmatpush1.msra.mxu0 %v948
    %968 = vmatprep.subr.mxu0 0.0
    %969 = vmatpush1.msra.mxu0 %v949
    %970 = vmatprep.subr.mxu0 0.0
    %971 = vmatpush1.msra.mxu0 %v950
    %972 = vmatprep.subr.mxu0 0.0
    %973 = vmatpush1.msra.mxu0 %v951
    %974 = vmatprep.subr.mxu0 0.0
    %975 = vmatpush1.msra.mxu0 %v952
    %976 = vmatprep.subr.mxu0 0.0
    %977 = vmatpush1.msra.mxu0 0.0
    %978 = vmatprep.subr.mxu0 0.0
    %979 = vmatpush1.msra.mxu0 0.0
    %980 = vmatprep.subr.mxu0 0.0
    %981 = vmatpush1.msra.mxu0 0.0
    %982 = vmatprep.subr.mxu0 0.0
    %983 = vmatpush1.msra.mxu0 0.0
    %984 = vmatprep.subr.mxu0 0.0
    %985 = vmatpush1.msra.mxu0 0.0
    %986 = vmatprep.subr.mxu0 0.0
    %987 = vmatpush1.msra.mxu0 0.0
    %988 = vmatprep.subr.mxu0 0.0
    %989 = vmatpush1.msra.mxu0 0.0
    %990 = vmatprep.subr.mxu0 0.0
    %991 = vmatpush1.msra.mxu0 0.0
    %992 = vmatprep.subr.mxu0 0.0
    %993 = vmatpush1.msra.mxu0 0.0
    %994 = vmatprep.subr.mxu0 0.0
    %995 = vmatpush1.msra.mxu0 0.0
    %996 = vmatprep.subr.mxu0 0.0
    %997 = vmatpush1.msra.mxu0 0.0
    %998 = vmatprep.subr.mxu0 0.0
    %999 = vmatpush1.msra.mxu0 0.0
    %1000 = vmatprep.subr.mxu0 0.0
    %1001 = vmatpush1.msra.mxu0 0.0
    %1002 = vmatprep.subr.mxu0 0.0
    %1003 = vmatpush1.msra.mxu0 0.0
    %1004 = vmatprep.subr.mxu0 0.0
    %1005 = vmatpush1.msra.mxu0 0.0
    %1006 = vmatprep.subr.mxu0 0.0
    %1007 = vmatpush1.msra.mxu0 0.0
    %1008 = vmatprep.subr.mxu0 0.0
    %1009 = vmatpush1.msra.mxu0 0.0
    %1010 = vmatprep.subr.mxu0 0.0
    %1011 = vmatpush1.msra.mxu0 0.0
    %1012 = vmatprep.subr.mxu0 0.0
    %1013 = vmatpush1.msra.mxu0 0.0
    %1014 = vmatprep.subr.mxu0 0.0
    %1015 = vmatpush1.msra.mxu0 0.0
    %1016 = vmatprep.subr.mxu0 0.0
    %1017 = vmatpush1.msra.mxu0 0.0
    %1018 = vmatprep.subr.mxu0 0.0
    %1019 = vmatpush1.msra.mxu0 0.0
    %1020 = vmatprep.subr.mxu0 0.0
    %1021 = vmatpush1.msra.mxu0 0.0
    %1022 = vmatprep.subr.mxu0 0.0
    %1023 = vmatpush1.msra.mxu0 0.0
    %1024 = vmatprep.mubr.f32.mxu0 0.0
    %1025 = vmatmul.mubr.f32.gmra.mrb[0].mxu0 %v958
    %v1026 = vpop.f32.mrb[0].mxu0
    %v1027 = vadd.f32 %v956, %v1026
    %v1028 = vpop.f32.mrb[0].mxu0
    %1029 = vdwg.mxu0
    %v1030 = vsel %vm95, %v1027, 0.0
    %v1031 = vrot.slane %v1030, 4
    %v1032 = vadd.f32 %v1030, %v1031
    %v1033 = vrot.slane %v1032, 2
    %v1034 = vadd.f32 %v1032, %v1033
    %v1035 = vrot.slane %v1034, 1
    %v1036 = vadd.f32 %v1034, %v1035
    %v1037 = vrcp.pop 8.0
    %v1038 = vmul.f32 %v1036, %v1037
    %v1039 = vsub.f32 %v1027, %v1038
    %v1040 = vmul.f32 %v1039, %v1039
    %v1041 = vsel %vm95, %v1040, 0.0
    %v1042 = vrot.slane %v1041, 4
    %v1043 = vadd.f32 %v1041, %v1042
    %v1044 = vrot.slane %v1043, 2
    %v1045 = vadd.f32 %v1043, %v1044
    %v1046 = vrot.slane %v1045, 1
    %v1047 = vadd.f32 %v1045, %v1046
    %v1048 = vmul.f32 %v1047, %v1037
    %v1049 = vadd.f32 %v1048, 64.0
    %v1050 = vrsqrt.pop %v1049
    %v1051 = vmul.f32 %v1039, %v1050
    %v1052 = vlaneseq
    %v1053 = vshrl.u32 %v1052, 7
    %v1054 = vsub.s32 0, %v1053
    %v1055 = vrot.slane %v933, %v1054
    %v1056 = vmul.f32 %v1051, %v1055
    %v1057 = vlaneseq
    %v1058 = vshrl.u32 %v1057, 7
    %v1059 = vsub.s32 0, %v1058
    %v1060 = vrot.slane %v934, %v1059
    %v1061 = vadd.f32 %v1056, %v1060
    %v1062 = vmax.f32 %v1061, 0.0
    %v1063 = vld [vmem:[%s4] sm:$0xff]
    %v1064 = vld [vmem:[%s4 + $0x8] sm:$0xff]
    %v1065 = vld [vmem:[%s4 + $0x10] sm:$0xff]
    %v1066 = vld [vmem:[%s4 + $0x18] sm:$0xff]
    %v1067 = vld [vmem:[%s4 + $0x20] sm:$0xff]
    %v1068 = vld [vmem:[%s4 + $0x28] sm:$0xff]
    %v1069 = vld [vmem:[%s4 + $0x30] sm:$0xff]
    %v1070 = vld [vmem:[%s4 + $0x38] sm:$0xff]
    %v1071 = vlaneseq
    %v1072 = vshrl.u32 %v1071, 7
    %v1073 = vsub.s32 0, %v1072
    %v1074 = vrot.slane %v935, %v1073
    %v1076 = vsel %vm95, %v1062, 0
    %1078 = vmatprep.subr.mxu0 0.0
    %1079 = vmatpush1.msra.mxu0 %v1063
    %1080 = vmatprep.subr.mxu0 0.0
    %1081 = vmatpush1.msra.mxu0 %v1064
    %1082 = vmatprep.subr.mxu0 0.0
    %1083 = vmatpush1.msra.mxu0 %v1065
    %1084 = vmatprep.subr.mxu0 0.0
    %1085 = vmatpush1.msra.mxu0 %v1066
    %1086 = vmatprep.subr.mxu0 0.0
    %1087 = vmatpush1.msra.mxu0 %v1067
    %1088 = vmatprep.subr.mxu0 0.0
    %1089 = vmatpush1.msra.mxu0 %v1068
    %1090 = vmatprep.subr.mxu0 0.0
    %1091 = vmatpush1.msra.mxu0 %v1069
    %1092 = vmatprep.subr.mxu0 0.0
    %1093 = vmatpush1.msra.mxu0 %v1070
    %1094 = vmatprep.subr.mxu0 0.0
    %1095 = vmatpush1.msra.mxu0 0.0
    %1096 = vmatprep.subr.mxu0 0.0
    %1097 = vmatpush1.msra.mxu0 0.0
    %1098 = vmatprep.subr.mxu0 0.0
    %1099 = vmatpush1.msra.mxu0 0.0
    %1100 = vmatprep.subr.mxu0 0.0
    %1101 = vmatpush1.msra.mxu0 0.0
    %1102 = vmatprep.subr.mxu0 0.0
    %1103 = vmatpush1.msra.mxu0 0.0
    %1104 = vmatprep.subr.mxu0 0.0
    %1105 = vmatpush1.msra.mxu0 0.0
    %1106 = vmatprep.subr.mxu0 0.0
    %1107 = vmatpush1.msra.mxu0 0.0
    %1108 = vmatprep.subr.mxu0 0.0
    %1109 = vmatpush1.msra.mxu0 0.0
    %1110 = vmatprep.subr.mxu0 0.0
    %1111 = vmatpush1.msra.mxu0 0.0
    %1112 = vmatprep.subr.mxu0 0.0
    %1113 = vmatpush1.msra.mxu0 0.0
    %1114 = vmatprep.subr.mxu0 0.0
    %1115 = vmatpush1.msra.mxu0 0.0
    %1116 = vmatprep.subr.mxu0 0.0
    %1117 = vmatpush1.msra.mxu0 0.0
    %1118 = vmatprep.subr.mxu0 0.0
    %1119 = vmatpush1.msra.mxu0 0.0
    %1120 = vmatprep.subr.mxu0 0.0
    %1121 = vmatpush1.msra.mxu0 0.0
    %1122 = vmatprep.subr.mxu0 0.0
    %1123 = vmatpush1.msra.mxu0 0.0
    %1124 = vmatprep.subr.mxu0 0.0
    %1125 = vmatpush1.msra.mxu0 0.0
    %1126 = vmatprep.subr.mxu0 0.0
    %1127 = vmatpush1.msra.mxu0 0.0
    %1128 = vmatprep.subr.mxu0 0.0
    %1129 = vmatpush1.msra.mxu0 0.0
    %1130 = vmatprep.subr.mxu0 0.0
    %1131 = vmatpush1.msra.mxu0 0.0
    %1132 = vmatprep.subr.mxu0 0.0
    %1133 = vmatpush1.msra.mxu0 0.0
    %1134 = vmatprep.subr.mxu0 0.0
    %1135 = vmatpush1.msra.mxu0 0.0
    %1136 = vmatprep.subr.mxu0 0.0
    %1137 = vmatpush1.msra.mxu0 0.0
    %1138 = vmatprep.subr.mxu0 0.0
    %1139 = vmatpush1.msra.mxu0 0.0
    %1140 = vmatprep.subr.mxu0 0.0
    %1141 = vmatpush1.msra.mxu0 0.0
    %1142 = vmatprep.mubr.f32.mxu0 0.0
    %1143 = vmatmul.mubr.f32.gmra.mrb[0].mxu0 %v1076
    %v1144 = vpop.f32.mrb[0].mxu0
    %v1145 = vadd.f32 %v1074, %v1144
    %v1146 = vpop.f32.mrb[0].mxu0
    %1147 = vdwg.mxu0
    %v1148 = vsel %vm517, %v1145, 0.0
    %v1149 = vrot.slane %v1148, 4
    %v1150 = vadd.f32 %v1148, %v1149
    %v1151 = vrot.slane %v1150, 2
    %v1152 = vadd.f32 %v1150, %v1151
    %v1153 = vrot.slane %v1152, 1
    %v1154 = vadd.f32 %v1152, %v1153
    %v1155 = vmul.f32 %v1154, %v1037
    %v1156 = vsub.f32 %v1145, %v1155
    %v1157 = vmul.f32 %v1156, %v1156
    %v1158 = vsel %vm517, %v1157, 0.0
    %v1159 = vrot.slane %v1158, 4
    %v1160 = vadd.f32 %v1158, %v1159
    %v1161 = vrot.slane %v1160, 2
    %v1162 = vadd.f32 %v1160, %v1161
    %v1163 = vrot.slane %v1162, 1
    %v1164 = vadd.f32 %v1162, %v1163
    %v1165 = vmul.f32 %v1164, %v1037
    %v1166 = vadd.f32 %v1165, 32.0
    %v1167 = vrsqrt.pop %v1166
    %v1168 = vmul.f32 %v1156, %v1167
    %v1169 = vlaneseq
    %v1170 = vshrl.u32 %v1169, 7
    %v1171 = vsub.s32 0, %v1170
    %v1172 = vrot.slane %v936, %v1171
    %v1173 = vmul.f32 %v1168, %v1172
    %v1174 = vlaneseq
    %v1175 = vshrl.u32 %v1174, 7
    %v1176 = vsub.s32 0, %v1175
    %v1177 = vrot.slane %v937, %v1176
    %v1178 = vadd.f32 %v1173, %v1177
    %v1179 = vmax.f32 %v1178, 0.0
    %v1180 = vld [vmem:[%s5] sm:$0xff]
    %v1181 = vld [vmem:[%s5 + $0x8] sm:$0xff]
    %v1182 = vld [vmem:[%s5 + $0x10] sm:$0xff]
    %v1183 = vld [vmem:[%s5 + $0x18] sm:$0xff]
    %v1184 = vlaneseq
    %v1185 = vshrl.u32 %v1184, 7
    %v1186 = vsub.s32 0, %v1185
    %v1187 = vrot.slane %v938, %v1186
    %v1189 = vsel %vm517, %v1179, 0
    %1191 = vmatprep.subr.mxu0 0.0
    %1192 = vmatpush1.msra.mxu0 %v1180
    %1193 = vmatprep.subr.mxu0 0.0
    %1194 = vmatpush1.msra.mxu0 %v1181
    %1195 = vmatprep.subr.mxu0 0.0
    %1196 = vmatpush1.msra.mxu0 %v1182
    %1197 = vmatprep.subr.mxu0 0.0
    %1198 = vmatpush1.msra.mxu0 %v1183
    %1199 = vmatprep.subr.mxu0 0.0
    %1200 = vmatpush1.msra.mxu0 0.0
    %1201 = vmatprep.subr.mxu0 0.0
    %1202 = vmatpush1.msra.mxu0 0.0
    %1203 = vmatprep.subr.mxu0 0.0
    %1204 = vmatpush1.msra.mxu0 0.0
    %1205 = vmatprep.subr.mxu0 0.0
    %1206 = vmatpush1.msra.mxu0 0.0
    %1207 = vmatprep.subr.mxu0 0.0
    %1208 = vmatpush1.msra.mxu0 0.0
    %1209 = vmatprep.subr.mxu0 0.0
    %1210 = vmatpush1.msra.mxu0 0.0
    %1211 = vmatprep.subr.mxu0 0.0
    %1212 = vmatpush1.msra.mxu0 0.0
    %1213 = vmatprep.subr.mxu0 0.0
    %1214 = vmatpush1.msra.mxu0 0.0
    %1215 = vmatprep.subr.mxu0 0.0
    %1216 = vmatpush1.msra.mxu0 0.0
    %1217 = vmatprep.subr.mxu0 0.0
    %1218 = vmatpush1.msra.mxu0 0.0
    %1219 = vmatprep.subr.mxu0 0.0
    %1220 = vmatpush1.msra.mxu0 0.0
    %1221 = vmatprep.subr.mxu0 0.0
    %1222 = vmatpush1.msra.mxu0 0.0
    %1223 = vmatprep.subr.mxu0 0.0
    %1224 = vmatpush1.msra.mxu0 0.0
    %1225 = vmatprep.subr.mxu0 0.0
    %1226 = vmatpush1.msra.mxu0 0.0
    %1227 = vmatprep.subr.mxu0 0.0
    %1228 = vmatpush1.msra.mxu0 0.0
    %1229 = vmatprep.subr.mxu0 0.0
    %1230 = vmatpush1.msra.mxu0 0.0
    %1231 = vmatprep.subr.mxu0 0.0
    %1232 = vmatpush1.msra.mxu0 0.0
    %1233 = vmatprep.subr.mxu0 0.0
    %1234 = vmatpush1.msra.mxu0 0.0
    %1235 = vmatprep.subr.mxu0 0.0
    %1236 = vmatpush1.msra.mxu0 0.0
    %1237 = vmatprep.subr.mxu0 0.0
    %1238 = vmatpush1.msra.mxu0 0.0
    %1239 = vmatprep.subr.mxu0 0.0
    %1240 = vmatpush1.msra.mxu0 0.0
    %1241 = vmatprep.subr.mxu0 0.0
    %1242 = vmatpush1.msra.mxu0 0.0
    %1243 = vmatprep.subr.mxu0 0.0
    %1244 = vmatpush1.msra.mxu0 0.0
    %1245 = vmatprep.subr.mxu0 0.0
    %1246 = vmatpush1.msra.mxu0 0.0
    %1247 = vmatprep.subr.mxu0 0.0
    %1248 = vmatpush1.msra.mxu0 0.0
    %1249 = vmatprep.subr.mxu0 0.0
    %1250 = vmatpush1.msra.mxu0 0.0
    %1251 = vmatprep.subr.mxu0 0.0
    %1252 = vmatpush1.msra.mxu0 0.0
    %1253 = vmatprep.subr.mxu0 0.0
    %1254 = vmatpush1.msra.mxu0 0.0
    %1255 = vmatprep.mubr.f32.mxu0 0.0
    %1256 = vmatmul.mubr.f32.gmra.mrb[0].mxu0 %v1189
    %v1257 = vpop.f32.mrb[0].mxu0
    %v1258 = vadd.f32 %v1187, %v1257
    %v1259 = vpop.f32.mrb[0].mxu0
    %1260 = vdwg.mxu0
    %vm1261 = vcmask 48128
    %v1262 = vsel %vm1261, %v1258, 0.0
    %v1263 = vrot.slane %v1262, 4
    %v1264 = vadd.f32 %v1262, %v1263
    %v1265 = vrot.slane %v1264, 2
    %v1266 = vadd.f32 %v1264, %v1265
    %v1267 = vrot.slane %v1266, 1
    %v1268 = vadd.f32 %v1266, %v1267
    %v1269 = vmul.f32 %v1268, %v1037
    %v1270 = vsub.f32 %v1258, %v1269
    %v1271 = vmul.f32 %v1270, %v1270
    %v1272 = vsel %vm1261, %v1271, 0.0
    %v1273 = vrot.slane %v1272, 4
    %v1274 = vadd.f32 %v1272, %v1273
    %v1275 = vrot.slane %v1274, 2
    %v1276 = vadd.f32 %v1274, %v1275
    %v1277 = vrot.slane %v1276, 1
    %v1278 = vadd.f32 %v1276, %v1277
    %v1279 = vmul.f32 %v1278, %v1037
    %v1280 = vadd.f32 %v1279, 32.0
    %v1281 = vrsqrt.pop %v1280
    %v1282 = vmul.f32 %v1270, %v1281
    %v1283 = vlaneseq
    %v1284 = vshrl.u32 %v1283, 7
    %v1285 = vsub.s32 0, %v1284
    %v1286 = vrot.slane %v939, %v1285
    %v1287 = vmul.f32 %v1282, %v1286
    %v1288 = vlaneseq
    %v1289 = vshrl.u32 %v1288, 7
    %v1290 = vsub.s32 0, %v1289
    %v1291 = vrot.slane %v940, %v1290
    %v1292 = vadd.f32 %v1287, %v1291
    %v1293 = vmax.f32 %v1292, 0.0
    %v1294 = vsel %vm1261, %v1293, -inf
    %1295 = vmax.xlane.f32.xlu0 %v1294
    %v1296 = vpop.xlane.xlu0 %1295
    %v1297 = vsub.f32 %v1293, %v1296
    %v1298 = vmul.f32 %v1297, 1.442695
    %v1299 = vpow.pop %v1298
    %v1300 = vsel %vm1261, %v1299, 0.0
    %1301 = vadd.xlane.f32.xlu0 %v1300
    %v1302 = vpop.xlane.xlu0 %1301
    %v1303 = vlog2.pop %v1302
    %v1304 = vmul.f32 %v1303, 0.6931472
    %v1305 = vadd.f32 %v1304, %v1296
    %1306 = vset.pattern.permute.xlu0 0
    %1307 = vperm.xlu0 %1306, %v34
    %v1308 = vpop.permute.xlu0 %1307
    %vm1309 = vcmp.eq.s32.totalorder %v1308, %v36
    %v1310 = vsel %vm1309, 1, 0
    %v1311 = vcvt.s32.f32 %v1310
    %v1312 = vmul.f32 %v1293, %v1311
    %v1313 = vsel %vm1261, %v1312, 0.0
    %1314 = vadd.xlane.f32.xlu0 %v1313
    %v1315 = vpop.xlane.xlu0 %1314
    %v1316 = vsub.f32 %v1305, %v1315
    %vm1317 = vcmask 7168
    %v1318 = vsel %vm1317, %v1316, 0.0
    %1319 = vadd.xlane.f32.xlu0 %v1318
    %v1320 = vpop.xlane.xlu0 %1319
    %v1321 = vrot.slane %v1320, 4
    %v1322 = vadd.f32 %v1320, %v1321
    %v1323 = vrot.slane %v1322, 2
    %v1324 = vadd.f32 %v1322, %v1323
    %v1325 = vrot.slane %v1324, 1
    %v1326 = vadd.f32 %v1324, %v1325
    %s1327 = vtos %v1326
    %v1328 = vrcp.pop 8.0
    %s1329 = vtos %v1328
    %s1330 = smul.f32 %s1327, %s1329
    %s1331 = smul.f32 %s931, 0.5
    %s1332 = sadd.f32 %s1331, %s1330
    %s1333 = scalar_lea.smem [#allocation2], 0
    %1334 = sst [smem:[%s1333]] %s1332
    // Predicated region
    $region30: #{line_forward.1} parent=1 // pred_check
      _
    $region31: #{line_forward.1} parent=1 // pred_check_branch
      %1336 = sbr.rel (0) target = $region33
    $region32: #{line_forward.1} parent=1 // pred_region
      %s1338 = ssub.s32 16, 16
      %1339 = vsyncadd [#allocation3], %s1338
      %1342 = dma.smem_to_hbm [#allocation2], 16, %s7, [#allocation3]
    $region33: #{line_forward.1} parent=1 // pred_fallthru
      _
    // Predicated region
    $region34: #{line_forward.1} parent=1 // pred_check
      _
    $region35: #{line_forward.1} parent=1 // pred_check_branch
      %1344 = sbr.rel (0) target = $region37
    $region36: #{line_forward.1} parent=1 // pred_region
      %1345 = dma.done [#allocation3], 16
    $region37: #{line_forward.1} parent=1 // pred_fallthru
      _
    %1346 = sfence
    %1347 = vsyncpa [#allocation3], 1

</llo_original>
